<compile_context>
chip_gen: v7x
topology: tpu7x:2x2x1
jax: 0.10.0
libtpu: 0.0.40
codegen_flags: <defaults>
</compile_context>

<pallas_src>
import functools

import numpy as np
import jax
import jax.numpy as jnp
from jax.experimental import pallas as pl
from jax.experimental.pallas import tpu as pltpu

N_GRID = 1944
LANES = 128


# -----------------------------------------------------------------------------
# Bias slab helper: one (n_layers, 128) f32 slab, each row a zero-padded bias.
# Rows are lane-aligned so in-kernel static slices are free.
# -----------------------------------------------------------------------------
def _bias_slab(biases):
    max_d = max(int(b.shape[0]) for b in biases)
    width = max(LANES, ((max_d + LANES - 1) // LANES) * LANES)
    slab = jnp.zeros((len(biases), width), jnp.float32)
    for i, b in enumerate(biases):
        slab = slab.at[i, : int(b.shape[0])].set(b.astype(jnp.float32))
    return slab


# -----------------------------------------------------------------------------
# Kernel 1: fused PointNetVanilla  (pointwise MLP -> max over points -> FC MLP)
# -----------------------------------------------------------------------------
def _pointnet_kernel(x_ref, *refs, n_mlp, n_fc, mlp_last_relu):
    o_ref = refs[-1]
    b_ref = refs[-2]          # (n_mlp + n_fc, 128) bias slab
    w_refs = refs[:-2]

    h = x_ref[0].astype(jnp.float32)                       # (Npts, Cin)
    for i in range(n_mlp):
        w = w_refs[i][...]
        d = w.shape[1]
        b = b_ref[i:i + 1, :d]                             # (1, d), lane-aligned
        if w.shape[0] <= 4:
            # Tiny contraction (Cin=3): VPU broadcast-FMA, skip the MXU.
            y = b
            for c in range(w.shape[0]):
                y = y + h[:, c:c + 1] * w[c:c + 1, :]
        else:
            y = jnp.dot(h, w, preferred_element_type=jnp.float32) + b
        if i < n_mlp - 1 or mlp_last_relu:
            y = jnp.maximum(y, 0.0)
        h = y

    g = jnp.max(h, axis=0, keepdims=True)                  # global max-pool (1, Dmlp)
    for i in range(n_fc):
        w = w_refs[n_mlp + i][...]
        d = w.shape[1]
        b = b_ref[n_mlp + i:n_mlp + i + 1, :d]
        g = jnp.dot(g, w, preferred_element_type=jnp.float32) + b
        if i < n_fc - 1:
            g = jnp.maximum(g, 0.0)
    o_ref[0] = g.astype(o_ref.dtype)                       # (1, K)


def pallas_pointnet(X, mlp_w, fc_w, bias_slab, *, mlp_last_relu=False):
    """Fused PointNetVanilla: (B, Npts, Cin) -> codeword (B, 1, K)."""
    B, Npts, Cin = X.shape
    K = int(fc_w[-1].shape[1])
    n_mlp, n_fc = len(mlp_w), len(fc_w)

    all_w = list(mlp_w) + list(fc_w)
    inputs = [X] + all_w + [bias_slab]
    in_specs = [pl.BlockSpec((1, Npts, Cin), lambda b: (b, 0, 0))]
    in_specs += [pl.BlockSpec(w.shape, lambda b: (0, 0)) for w in all_w]
    in_specs += [pl.BlockSpec(bias_slab.shape, lambda b: (0, 0))]

    kernel = functools.partial(_pointnet_kernel, n_mlp=n_mlp, n_fc=n_fc,
                               mlp_last_relu=mlp_last_relu)
    return pl.pallas_call(
        kernel,
        out_shape=jax.ShapeDtypeStruct((B, 1, K), X.dtype),
        grid_spec=pltpu.PrefetchScalarGridSpec(
            num_scalar_prefetch=0,
            grid=(B,),
            in_specs=in_specs,
            out_specs=pl.BlockSpec((1, 1, K), lambda b: (b, 0, 0)),
        ),
        compiler_params=pltpu.CompilerParams(dimension_semantics=("parallel",)),
    )(*inputs)


# -----------------------------------------------------------------------------
# Kernel 2: fused Fold1 + Fold2 (concat-free, grid_fc pre-composed, MXU-only)
# -----------------------------------------------------------------------------
def _fold_kernel(g1_ref, f_ref, *refs, n1, n2):
    o_ref = refs[-1]
    b_ref = refs[-2]                      # bias slab: f1_rest..., b2_1, f2_rest...
    w_refs = refs[:-2]
    w1c_ref = w_refs[0]                   # (K, H1)   codeword half of fold1 layer 1
    f1_rest = w_refs[1:n1]                # n1-1 weights (last one padded to 8 cols)
    w2y_ref = w_refs[n1]                  # (8, H2)   fold1-output half of fold2 layer 1
    w2c_ref = w_refs[n1 + 1]              # (K, H2)   codeword half of fold2 layer 1
    f2_rest = w_refs[n1 + 2:n1 + 1 + n2]  # n2-1 weights

    f = f_ref[0].astype(jnp.float32)      # (1, K) codeword row

    # ---- Fold1 layer 1: g1 already holds fc(grid) @ W1[:9] + b1 -------------
    h = g1_ref[...] + jnp.dot(f, w1c_ref[...], preferred_element_type=jnp.float32)
    h = jnp.maximum(h, 0.0)
    bi = 0
    for j in range(n1 - 1):
        w = f1_rest[j][...]
        h = (jnp.dot(h, w, preferred_element_type=jnp.float32)
             + b_ref[bi:bi + 1, :w.shape[1]])
        if j < n1 - 2:                                     # doLastRelu=False
            h = jnp.maximum(h, 0.0)
        bi += 1
    y1 = h                                                 # (tile, d1_pad>=8)

    # ---- Fold2 layer 1: concat([y1, codeword]) split into two MXU matmuls ---
    h = (jnp.dot(y1, w2y_ref[...], preferred_element_type=jnp.float32)
         + jnp.dot(f, w2c_ref[...], preferred_element_type=jnp.float32)
         + b_ref[bi:bi + 1, :w2c_ref.shape[1]])
    bi += 1
    h = jnp.maximum(h, 0.0)
    for j in range(n2 - 1):
        w = f2_rest[j][...]
        h = (jnp.dot(h, w, preferred_element_type=jnp.float32)
             + b_ref[bi:bi + 1, :w.shape[1]])
        if j < n2 - 2:                                     # doLastRelu=False
            h = jnp.maximum(h, 0.0)
        bi += 1
    o_ref[0] = h.astype(o_ref.dtype)                       # (tile, out_dim=3)


def pallas_fold(g1, codeword, w1c, f1_rest_w, w2y, w2c, f2_rest_w, bias_slab,
                *, tile_rows=216):
    """Fused Fold1+Fold2.  Returns (B, N_GRID, out_dim) with no padding/slice."""
    B, _, K = codeword.shape
    n_grid, H1 = g1.shape
    assert n_grid % tile_rows == 0 and tile_rows % 8 == 0
    n1 = 1 + len(f1_rest_w)
    n2 = 1 + len(f2_rest_w)
    assert n1 >= 2 and n2 >= 2
    out_dim = int(f2_rest_w[-1].shape[1])
    nt = n_grid // tile_rows

    weights = [w1c] + list(f1_rest_w) + [w2y, w2c] + list(f2_rest_w)
    inputs = [g1, codeword] + weights + [bias_slab]
    in_specs = [
        pl.BlockSpec((tile_rows, H1), lambda b, t: (t, 0)),
        pl.BlockSpec((1, 1, K), lambda b, t: (b, 0, 0)),
    ]
    in_specs += [pl.BlockSpec(w.shape, lambda b, t: (0, 0)) for w in weights]
    in_specs += [pl.BlockSpec(bias_slab.shape, lambda b, t: (0, 0))]

    kernel = functools.partial(_fold_kernel, n1=n1, n2=n2)
    return pl.pallas_call(
        kernel,
        out_shape=jax.ShapeDtypeStruct((B, n_grid, out_dim), codeword.dtype),
        grid_spec=pltpu.PrefetchScalarGridSpec(
            num_scalar_prefetch=0,
            grid=(B, nt),
            in_specs=in_specs,
            # Block last dim (3) equals the full array dim -> legal BlockSpec;
            # writeback is the exact 47 KB needed (no 128-wide inflation).
            out_specs=pl.BlockSpec((1, tile_rows, out_dim), lambda b, t: (b, t, 0)),
        ),
        compiler_params=pltpu.CompilerParams(
            dimension_semantics=("parallel", "parallel")),
    )(*inputs)


# -----------------------------------------------------------------------------
# One-time parameter preparation (runs at setup, NOT inside the jitted forward)
# -----------------------------------------------------------------------------
def prepare_params(mlp_layers, fc_layers, fold1_layers, fold2_layers,
                   grid, gfc_w, gfc_b):
    hp = jax.lax.Precision.HIGHEST
    n1, n2 = len(fold1_layers), len(fold2_layers)
    assert n1 >= 2 and n2 >= 2
    assert mlp_layers[-1][0].shape[1] == fc_layers[0][0].shape[0]

    # ---- PointNet ----
    pn_mlp_w = [w for w, _ in mlp_layers]
    pn_fc_w = [w for w, _ in fc_layers]
    pn_bias = _bias_slab([b for _, b in mlp_layers] + [b for _, b in fc_layers])
    K = int(pn_fc_w[-1].shape[1])

    # ---- Fold1 layer 1: compose grid_fc and fold its grid half + bias into g1.
    w1, b1 = fold1_layers[0]
    assert w1.shape[0] == 9 + K
    grid_t = jnp.dot(grid, gfc_w, precision=hp) + gfc_b           # (1944, 9)
    g1 = jnp.dot(grid_t, w1[:9, :], precision=hp) + b1            # (1944, H1)
    w1c = w1[9:, :]                                               # (K, H1)

    # ---- Fold1 remaining layers; pad the last one's 3 output channels to 8
    #      so fold2 layer 1 can run as a K=8 MXU matmul (no XLU broadcast loop).
    f1_rest_w = [w for w, _ in fold1_layers[1:]]
    f1_rest_b = [b for _, b in fold1_layers[1:]]
    d1_out = int(f1_rest_w[-1].shape[1])
    d1_pad = max(8, d1_out)
    if d1_pad != d1_out:
        wl, bl = f1_rest_w[-1], f1_rest_b[-1]
        f1_rest_w[-1] = jnp.zeros((wl.shape[0], d1_pad), wl.dtype).at[:, :d1_out].set(wl)
        f1_rest_b[-1] = jnp.zeros((d1_pad,), bl.dtype).at[:d1_out].set(bl)

    # ---- Fold2 layer 1: split concat([fold1_out, codeword]) weight.
    w2, b2 = fold2_layers[0]
    assert w2.shape[0] == d1_out + K
    w2y = jnp.zeros((d1_pad, w2.shape[1]), w2.dtype).at[:d1_out, :].set(w2[:d1_out, :])
    w2c = w2[d1_out:, :]
    f2_rest_w = [w for w, _ in fold2_layers[1:]]
    f2_rest_b = [b for _, b in fold2_layers[1:]]

    fold_bias = _bias_slab(f1_rest_b + [b2] + f2_rest_b)

    return {
        "pn_mlp_w": pn_mlp_w, "pn_fc_w": pn_fc_w, "pn_bias": pn_bias,
        "g1": g1, "w1c": w1c, "f1_rest_w": f1_rest_w,
        "w2y": w2y, "w2c": w2c, "f2_rest_w": f2_rest_w, "fold_bias": fold_bias,
    }


# -----------------------------------------------------------------------------
# FoldingNetShapes forward: exactly two pallas_calls, zero auxiliary XLA ops.
# -----------------------------------------------------------------------------
def foldingnet_shapes_forward(X, params, *, mlp_last_relu=False, tile_rows=216):
    codeword = pallas_pointnet(X, params["pn_mlp_w"], params["pn_fc_w"],
                               params["pn_bias"], mlp_last_relu=mlp_last_relu)
    return pallas_fold(params["g1"], codeword, params["w1c"], params["f1_rest_w"],
                       params["w2y"], params["w2c"], params["f2_rest_w"],
                       params["fold_bias"], tile_rows=tile_rows)


# -----------------------------------------------------------------------------
# Pure-JAX reference (mirrors the PyTorch forward) for a tolerance-checked test.
# -----------------------------------------------------------------------------
def reference_forward(X, mlp_layers, fc_layers, fold1_layers, fold2_layers,
                      grid, gfc_w, gfc_b, mlp_last_relu=False):
    hp = jax.lax.Precision.HIGHEST
    h = X
    for i, (w, b) in enumerate(mlp_layers):
        h = jnp.dot(h, w, precision=hp) + b
        if i < len(mlp_layers) - 1 or mlp_last_relu:
            h = jnp.maximum(h, 0.0)
    g = jnp.max(h, axis=1)                                        # (B, Dmlp)
    for i, (w, b) in enumerate(fc_layers):
        g = jnp.dot(g, w, precision=hp) + b
        if i < len(fc_layers) - 1:
            g = jnp.maximum(g, 0.0)
    B, N = X.shape[0], grid.shape[0]
    code = jnp.broadcast_to(g[:, None, :], (B, N, g.shape[-1]))
    tmp = jnp.dot(grid, gfc_w, precision=hp) + gfc_b              # fc(grid)
    tmp = jnp.broadcast_to(tmp[None], (B, N, 9))
    f = jnp.concatenate([tmp, code], axis=2)
    for i, (w, b) in enumerate(fold1_layers):
        f = jnp.dot(f, w, precision=hp) + b
        if i < len(fold1_layers) - 1:
            f = jnp.maximum(f, 0.0)
    f = jnp.concatenate([f, code], axis=2)
    for i, (w, b) in enumerate(fold2_layers):
        f = jnp.dot(f, w, precision=hp) + b
        if i < len(fold2_layers) - 1:
            f = jnp.maximum(f, 0.0)
    return f


# -----------------------------------------------------------------------------
# Constant grids (box / cylinder / sphere), each (1944, 3), hstacked -> (1944, 9)
# TODO(synk): exact point tables of make_box/make_cylinder/make_sphere from the
# reference repo are not reproduced; deterministic same-shape grids are used.
# -----------------------------------------------------------------------------
def make_box():
    lin = np.linspace(-0.5, 0.5, 18)
    u, v = np.meshgrid(lin, lin)
    u, v = u.reshape(-1), v.reshape(-1)
    h = 0.5 * np.ones_like(u)
    faces = [
        np.stack([u, v, h], 1), np.stack([u, v, -h], 1),
        np.stack([u, h, v], 1), np.stack([u, -h, v], 1),
        np.stack([h, u, v], 1), np.stack([-h, u, v], 1),
    ]
    return np.concatenate(faces, 0).astype(np.float32)            # (1944, 3)


def make_cylinder():
    theta = np.linspace(0.0, 2.0 * np.pi, 108, endpoint=False)
    z = np.linspace(-0.5, 0.5, 18)
    t, zz = np.meshgrid(theta, z)
    pts = np.stack([0.5 * np.cos(t), 0.5 * np.sin(t), zz], -1)
    return pts.reshape(-1, 3).astype(np.float32)                  # (1944, 3)


def make_sphere():
    phi = np.linspace(0.0, np.pi, 18)
    theta = np.linspace(0.0, 2.0 * np.pi, 108, endpoint=False)
    t, p = np.meshgrid(theta, phi)
    pts = np.stack(
        [0.5 * np.sin(p) * np.cos(t), 0.5 * np.sin(p) * np.sin(t), 0.5 * np.cos(p)], -1
    )
    return pts.reshape(-1, 3).astype(np.float32)                  # (1944, 3)


# -----------------------------------------------------------------------------
# Parameter init (deterministic, PyTorch-Linear-style uniform init)
# -----------------------------------------------------------------------------
def init_linear(key, din, dout):
    kw, kb = jax.random.split(key)
    s = 1.0 / np.sqrt(din)
    w = jax.random.uniform(kw, (din, dout), jnp.float32, -s, s)
    b = jax.random.uniform(kb, (dout,), jnp.float32, -s, s)
    return w, b


def init_mlp(key, dims):
    keys = jax.random.split(key, len(dims) - 1)
    return [init_linear(k, dims[i], dims[i + 1]) for i, k in enumerate(keys)]


# -----------------------------------------------------------------------------
# Main
# -----------------------------------------------------------------------------
if __name__ == "__main__":
    MLP_dims = (3, 32, 64)
    FC_dims = (64, 32, 16)
    K_code = FC_dims[-1]
    Folding1_dims = (9 + K_code, 32, 3)
    Folding2_dims = (3 + K_code, 32, 3)

    key = jax.random.PRNGKey(0)
    k_mlp, k_fc, k_f1, k_f2, k_gfc, k_x = jax.random.split(key, 6)

    grid_np = np.hstack((make_box(), make_cylinder(), make_sphere()))   # (1944, 9)
    grid = jnp.asarray(grid_np, jnp.float32)
    gfc_w, gfc_b = init_linear(k_gfc, 9, 9)

    mlp_layers = init_mlp(k_mlp, MLP_dims)
    fc_layers = init_mlp(k_fc, FC_dims)
    fold1_layers = init_mlp(k_f1, Folding1_dims)
    fold2_layers = init_mlp(k_f2, Folding2_dims)

    # One-time parameter preparation (g1 composition, concat splits, bias slabs).
    params = prepare_params(mlp_layers, fc_layers, fold1_layers, fold2_layers,
                            grid, gfc_w, gfc_b)

    # Input point cloud: (B, Npts, 3)
    B, Npts = 2, 8
    X = jax.random.normal(k_x, (B, Npts, 3), jnp.float32)

    fwd = jax.jit(foldingnet_shapes_forward)
    out = jax.block_until_ready(fwd(X, params))
    assert out.shape == (B, N_GRID, Folding2_dims[-1]), out.shape

    # Tolerance-asserted reference comparison (review correctness item).
    # Tolerance is loose enough to cover the in-kernel MXU f32 pass structure
    # vs. the HIGHEST-precision XLA reference (known TPU matmul-precision gap).
    ref = reference_forward(X, mlp_layers, fc_layers, fold1_layers, fold2_layers,
                            grid, gfc_w, gfc_b)
    np.testing.assert_allclose(np.asarray(out), np.asarray(ref),
                               rtol=2e-2, atol=2e-2)

    print("KERNEL_OK")
</pallas_src>

<mosaic_0001>
module attributes {stable_mosaic.version = 11 : i64} {
  func.func @_pointnet_kernel(%arg0: i32, %arg1: memref<1x8x3xf32, #tpu.memory_space<vmem>>, %arg2: memref<3x32xf32, #tpu.memory_space<vmem>>, %arg3: memref<32x64xf32, #tpu.memory_space<vmem>>, %arg4: memref<64x32xf32, #tpu.memory_space<vmem>>, %arg5: memref<32x16xf32, #tpu.memory_space<vmem>>, %arg6: memref<4x128xf32, #tpu.memory_space<vmem>>, %arg7: memref<1x1x16xf32, #tpu.memory_space<vmem>>) attributes {dimension_semantics = [#tpu.dimension_semantics<parallel>], iteration_bounds = array<i64: 2>, scalar_prefetch = 0 : i64, scratch_operands = 0 : i64, tpu.core_type = #tpu.core_type<tc>, window_params = [{transform_indices = @transform_0, window_bounds = array<i64: 1, 8, 3>}, {pipeline_mode = #tpu.pipeline_mode<synchronous>, transform_indices = @transform_1, window_bounds = array<i64: 3, 32>}, {pipeline_mode = #tpu.pipeline_mode<synchronous>, transform_indices = @transform_2, window_bounds = array<i64: 32, 64>}, {pipeline_mode = #tpu.pipeline_mode<synchronous>, transform_indices = @transform_3, window_bounds = array<i64: 64, 32>}, {pipeline_mode = #tpu.pipeline_mode<synchronous>, transform_indices = @transform_4, window_bounds = array<i64: 32, 16>}, {pipeline_mode = #tpu.pipeline_mode<synchronous>, transform_indices = @transform_5, window_bounds = array<i64: 4, 128>}, {transform_indices = @transform_6, window_bounds = array<i64: 1, 1, 16>}]} {
    %c0 = arith.constant 0 : index
    %c0_0 = arith.constant 0 : index
    %c0_1 = arith.constant 0 : index
    %0 = vector.load %arg1[%c0, %c0_0, %c0_1] : memref<1x8x3xf32, #tpu.memory_space<vmem>>, vector<1x8x3xf32>
    %1 = vector.shape_cast %0 : vector<1x8x3xf32> to vector<8x3xf32>
    %c0_2 = arith.constant 0 : index
    %c0_3 = arith.constant 0 : index
    %2 = vector.load %arg2[%c0_2, %c0_3] : memref<3x32xf32, #tpu.memory_space<vmem>>, vector<3x32xf32>
    %c0_4 = arith.constant 0 : index
    %c0_5 = arith.constant 0 : index
    %3 = vector.load %arg6[%c0_4, %c0_5] : memref<4x128xf32, #tpu.memory_space<vmem>>, vector<1x32xf32>
    %4 = vector.extract_strided_slice %1 {offsets = [0, 0], sizes = [8, 1], strides = [1, 1]} : vector<8x3xf32> to vector<8x1xf32>
    %5 = vector.extract_strided_slice %2 {offsets = [0, 0], sizes = [1, 32], strides = [1, 1]} : vector<3x32xf32> to vector<1x32xf32>
    %6 = vector.broadcast %4 : vector<8x1xf32> to vector<8x32xf32>
    %7 = vector.broadcast %5 : vector<1x32xf32> to vector<8x32xf32>
    %8 = arith.mulf %6, %7 : vector<8x32xf32>
    %9 = vector.broadcast %3 : vector<1x32xf32> to vector<8x32xf32>
    %10 = arith.addf %9, %8 : vector<8x32xf32>
    %11 = vector.extract_strided_slice %1 {offsets = [0, 1], sizes = [8, 1], strides = [1, 1]} : vector<8x3xf32> to vector<8x1xf32>
    %12 = vector.extract_strided_slice %2 {offsets = [1, 0], sizes = [1, 32], strides = [1, 1]} : vector<3x32xf32> to vector<1x32xf32>
    %13 = vector.broadcast %11 : vector<8x1xf32> to vector<8x32xf32>
    %14 = vector.broadcast %12 : vector<1x32xf32> to vector<8x32xf32>
    %15 = arith.mulf %13, %14 : vector<8x32xf32>
    %16 = arith.addf %10, %15 : vector<8x32xf32>
    %17 = vector.extract_strided_slice %1 {offsets = [0, 2], sizes = [8, 1], strides = [1, 1]} : vector<8x3xf32> to vector<8x1xf32>
    %18 = vector.extract_strided_slice %2 {offsets = [2, 0], sizes = [1, 32], strides = [1, 1]} : vector<3x32xf32> to vector<1x32xf32>
    %19 = vector.broadcast %17 : vector<8x1xf32> to vector<8x32xf32>
    %20 = vector.broadcast %18 : vector<1x32xf32> to vector<8x32xf32>
    %21 = arith.mulf %19, %20 : vector<8x32xf32>
    %22 = arith.addf %16, %21 : vector<8x32xf32>
    %cst = arith.constant 0.000000e+00 : f32
    %23 = vector.broadcast %cst : f32 to vector<8x32xf32>
    %24 = arith.maximumf %22, %23 : vector<8x32xf32>
    %c0_6 = arith.constant 0 : index
    %c0_7 = arith.constant 0 : index
    %25 = vector.load %arg3[%c0_6, %c0_7] : memref<32x64xf32, #tpu.memory_space<vmem>>, vector<32x64xf32>
    %c1 = arith.constant 1 : index
    %c0_8 = arith.constant 0 : index
    %26 = vector.load %arg6[%c1, %c0_8] : memref<4x128xf32, #tpu.memory_space<vmem>>, vector<1x64xf32>
    %cst_9 = arith.constant dense<0.000000e+00> : vector<8x64xf32>
    %27 = tpu.matmul %24, %25, %cst_9 {dimension_numbers = #tpu.dot_dimension_numbers<[1], [0], [0], [1], [0, 0, 1, 1], [], []>} : vector<8x32xf32>, vector<32x64xf32>, vector<8x64xf32> -> vector<8x64xf32>
    %28 = vector.broadcast %26 : vector<1x64xf32> to vector<8x64xf32>
    %29 = arith.addf %27, %28 : vector<8x64xf32>
    %cst_10 = arith.constant dense<0xFF800000> : vector<64xf32>
    %30 = vector.multi_reduction <maximumf>, %29, %cst_10 [0] : vector<8x64xf32> to vector<64xf32>
    %31 = vector.shape_cast %30 : vector<64xf32> to vector<1x64xf32>
    %c0_11 = arith.constant 0 : index
    %c0_12 = arith.constant 0 : index
    %32 = vector.load %arg4[%c0_11, %c0_12] : memref<64x32xf32, #tpu.memory_space<vmem>>, vector<64x32xf32>
    %c2 = arith.constant 2 : index
    %c0_13 = arith.constant 0 : index
    %33 = vector.load %arg6[%c2, %c0_13] : memref<4x128xf32, #tpu.memory_space<vmem>>, vector<1x32xf32>
    %cst_14 = arith.constant dense<0.000000e+00> : vector<1x32xf32>
    %34 = tpu.matmul %31, %32, %cst_14 {dimension_numbers = #tpu.dot_dimension_numbers<[1], [0], [0], [1], [0, 0, 1, 1], [], []>} : vector<1x64xf32>, vector<64x32xf32>, vector<1x32xf32> -> vector<1x32xf32>
    %35 = arith.addf %34, %33 : vector<1x32xf32>
    %cst_15 = arith.constant 0.000000e+00 : f32
    %36 = vector.broadcast %cst_15 : f32 to vector<1x32xf32>
    %37 = arith.maximumf %35, %36 : vector<1x32xf32>
    %c0_16 = arith.constant 0 : index
    %c0_17 = arith.constant 0 : index
    %38 = vector.load %arg5[%c0_16, %c0_17] : memref<32x16xf32, #tpu.memory_space<vmem>>, vector<32x16xf32>
    %c3 = arith.constant 3 : index
    %c0_18 = arith.constant 0 : index
    %39 = vector.load %arg6[%c3, %c0_18] : memref<4x128xf32, #tpu.memory_space<vmem>>, vector<1x16xf32>
    %cst_19 = arith.constant dense<0.000000e+00> : vector<1x16xf32>
    %40 = tpu.matmul %37, %38, %cst_19 {dimension_numbers = #tpu.dot_dimension_numbers<[1], [0], [0], [1], [0, 0, 1, 1], [], []>} : vector<1x32xf32>, vector<32x16xf32>, vector<1x16xf32> -> vector<1x16xf32>
    %41 = arith.addf %40, %39 : vector<1x16xf32>
    %c0_20 = arith.constant 0 : index
    %c0_21 = arith.constant 0 : index
    %c0_22 = arith.constant 0 : index
    %42 = vector.load %arg7[%c0_20, %c0_21, %c0_22] : memref<1x1x16xf32, #tpu.memory_space<vmem>>, vector<1x1x16xf32>
    %43 = vector.shape_cast %42 : vector<1x1x16xf32> to vector<1x16xf32>
    %44 = vector.shape_cast %41 : vector<1x16xf32> to vector<1x1x16xf32>
    tpu.vector_store %arg7[%c0_20, %c0_21, %c0_22], %44 {strides = array<i32>} : memref<1x1x16xf32, #tpu.memory_space<vmem>>, vector<1x1x16xf32>,
    return
  }
  func.func @transform_0(%arg0: i32) -> (i32, i32, i32) {
    %c0_i32 = arith.constant 0 : i32
    %c0_i32_0 = arith.constant 0 : i32
    %c0_i32_1 = arith.constant 0 : i32
    return %arg0, %c0_i32, %c0_i32_0 : i32, i32, i32
  }
  func.func @transform_1(%arg0: i32) -> (i32, i32) {
    %c0_i32 = arith.constant 0 : i32
    %c0_i32_0 = arith.constant 0 : i32
    %c0_i32_1 = arith.constant 0 : i32
    return %c0_i32, %c0_i32_0 : i32, i32
  }
  func.func @transform_2(%arg0: i32) -> (i32, i32) {
    %c0_i32 = arith.constant 0 : i32
    %c0_i32_0 = arith.constant 0 : i32
    %c0_i32_1 = arith.constant 0 : i32
    return %c0_i32, %c0_i32_0 : i32, i32
  }
  func.func @transform_3(%arg0: i32) -> (i32, i32) {
    %c0_i32 = arith.constant 0 : i32
    %c0_i32_0 = arith.constant 0 : i32
    %c0_i32_1 = arith.constant 0 : i32
    return %c0_i32, %c0_i32_0 : i32, i32
  }
  func.func @transform_4(%arg0: i32) -> (i32, i32) {
    %c0_i32 = arith.constant 0 : i32
    %c0_i32_0 = arith.constant 0 : i32
    %c0_i32_1 = arith.constant 0 : i32
    return %c0_i32, %c0_i32_0 : i32, i32
  }
  func.func @transform_5(%arg0: i32) -> (i32, i32) {
    %c0_i32 = arith.constant 0 : i32
    %c0_i32_0 = arith.constant 0 : i32
    %c0_i32_1 = arith.constant 0 : i32
    return %c0_i32, %c0_i32_0 : i32, i32
  }
  func.func @transform_6(%arg0: i32) -> (i32, i32, i32) {
    %c0_i32 = arith.constant 0 : i32
    %c0_i32_0 = arith.constant 0 : i32
    %c0_i32_1 = arith.constant 0 : i32
    return %arg0, %c0_i32, %c0_i32_0 : i32, i32, i32
  }
}

module attributes {stable_mosaic.version = 11 : i64} {
  func.func @_fold_kernel(%arg0: i32, %arg1: i32, %arg2: memref<216x32xf32, #tpu.memory_space<vmem>>, %arg3: memref<1x1x16xf32, #tpu.memory_space<vmem>>, %arg4: memref<16x32xf32, #tpu.memory_space<vmem>>, %arg5: memref<32x8xf32, #tpu.memory_space<vmem>>, %arg6: memref<8x32xf32, #tpu.memory_space<vmem>>, %arg7: memref<16x32xf32, #tpu.memory_space<vmem>>, %arg8: memref<32x3xf32, #tpu.memory_space<vmem>>, %arg9: memref<3x128xf32, #tpu.memory_space<vmem>>, %arg10: memref<1x216x3xf32, #tpu.memory_space<vmem>>) attributes {dimension_semantics = [#tpu.dimension_semantics<parallel>, #tpu.dimension_semantics<parallel>], iteration_bounds = array<i64: 2, 9>, scalar_prefetch = 0 : i64, scratch_operands = 0 : i64, tpu.core_type = #tpu.core_type<tc>, window_params = [{transform_indices = @transform_0, window_bounds = array<i64: 216, 32>}, {transform_indices = @transform_1, window_bounds = array<i64: 1, 1, 16>}, {pipeline_mode = #tpu.pipeline_mode<synchronous>, transform_indices = @transform_2, window_bounds = array<i64: 16, 32>}, {pipeline_mode = #tpu.pipeline_mode<synchronous>, transform_indices = @transform_3, window_bounds = array<i64: 32, 8>}, {pipeline_mode = #tpu.pipeline_mode<synchronous>, transform_indices = @transform_4, window_bounds = array<i64: 8, 32>}, {pipeline_mode = #tpu.pipeline_mode<synchronous>, transform_indices = @transform_5, window_bounds = array<i64: 16, 32>}, {pipeline_mode = #tpu.pipeline_mode<synchronous>, transform_indices = @transform_6, window_bounds = array<i64: 32, 3>}, {pipeline_mode = #tpu.pipeline_mode<synchronous>, transform_indices = @transform_7, window_bounds = array<i64: 3, 128>}, {transform_indices = @transform_8, window_bounds = array<i64: 1, 216, 3>}]} {
    %c0 = arith.constant 0 : index
    %c0_0 = arith.constant 0 : index
    %c0_1 = arith.constant 0 : index
    %0 = vector.load %arg3[%c0, %c0_0, %c0_1] : memref<1x1x16xf32, #tpu.memory_space<vmem>>, vector<1x1x16xf32>
    %1 = vector.shape_cast %0 : vector<1x1x16xf32> to vector<1x16xf32>
    %c0_2 = arith.constant 0 : index
    %c0_3 = arith.constant 0 : index
    %2 = vector.load %arg2[%c0_2, %c0_3] : memref<216x32xf32, #tpu.memory_space<vmem>>, vector<216x32xf32>
    %c0_4 = arith.constant 0 : index
    %c0_5 = arith.constant 0 : index
    %3 = vector.load %arg4[%c0_4, %c0_5] : memref<16x32xf32, #tpu.memory_space<vmem>>, vector<16x32xf32>
    %cst = arith.constant dense<0.000000e+00> : vector<1x32xf32>
    %4 = tpu.matmul %1, %3, %cst {dimension_numbers = #tpu.dot_dimension_numbers<[1], [0], [0], [1], [0, 0, 1, 1], [], []>} : vector<1x16xf32>, vector<16x32xf32>, vector<1x32xf32> -> vector<1x32xf32>
    %5 = vector.broadcast %4 : vector<1x32xf32> to vector<216x32xf32>
    %6 = arith.addf %2, %5 : vector<216x32xf32>
    %cst_6 = arith.constant 0.000000e+00 : f32
    %7 = vector.broadcast %cst_6 : f32 to vector<216x32xf32>
    %8 = arith.maximumf %6, %7 : vector<216x32xf32>
    %c0_7 = arith.constant 0 : index
    %c0_8 = arith.constant 0 : index
    %9 = vector.load %arg5[%c0_7, %c0_8] : memref<32x8xf32, #tpu.memory_space<vmem>>, vector<32x8xf32>
    %cst_9 = arith.constant dense<0.000000e+00> : vector<216x8xf32>
    %10 = tpu.matmul %8, %9, %cst_9 {dimension_numbers = #tpu.dot_dimension_numbers<[1], [0], [0], [1], [0, 0, 1, 1], [], []>} : vector<216x32xf32>, vector<32x8xf32>, vector<216x8xf32> -> vector<216x8xf32>
    %c0_10 = arith.constant 0 : index
    %c0_11 = arith.constant 0 : index
    %11 = vector.load %arg9[%c0_10, %c0_11] : memref<3x128xf32, #tpu.memory_space<vmem>>, vector<1x8xf32>
    %12 = vector.broadcast %11 : vector<1x8xf32> to vector<216x8xf32>
    %13 = arith.addf %10, %12 : vector<216x8xf32>
    %c0_12 = arith.constant 0 : index
    %c0_13 = arith.constant 0 : index
    %14 = vector.load %arg6[%c0_12, %c0_13] : memref<8x32xf32, #tpu.memory_space<vmem>>, vector<8x32xf32>
    %cst_14 = arith.constant dense<0.000000e+00> : vector<216x32xf32>
    %15 = tpu.matmul %13, %14, %cst_14 {dimension_numbers = #tpu.dot_dimension_numbers<[1], [0], [0], [1], [0, 0, 1, 1], [], []>} : vector<216x8xf32>, vector<8x32xf32>, vector<216x32xf32> -> vector<216x32xf32>
    %c0_15 = arith.constant 0 : index
    %c0_16 = arith.constant 0 : index
    %16 = vector.load %arg7[%c0_15, %c0_16] : memref<16x32xf32, #tpu.memory_space<vmem>>, vector<16x32xf32>
    %cst_17 = arith.constant dense<0.000000e+00> : vector<1x32xf32>
    %17 = tpu.matmul %1, %16, %cst_17 {dimension_numbers = #tpu.dot_dimension_numbers<[1], [0], [0], [1], [0, 0, 1, 1], [], []>} : vector<1x16xf32>, vector<16x32xf32>, vector<1x32xf32> -> vector<1x32xf32>
    %18 = vector.broadcast %17 : vector<1x32xf32> to vector<216x32xf32>
    %19 = arith.addf %15, %18 : vector<216x32xf32>
    %c1 = arith.constant 1 : index
    %c0_18 = arith.constant 0 : index
    %20 = vector.load %arg9[%c1, %c0_18] : memref<3x128xf32, #tpu.memory_space<vmem>>, vector<1x32xf32>
    %21 = vector.broadcast %20 : vector<1x32xf32> to vector<216x32xf32>
    %22 = arith.addf %19, %21 : vector<216x32xf32>
    %cst_19 = arith.constant 0.000000e+00 : f32
    %23 = vector.broadcast %cst_19 : f32 to vector<216x32xf32>
    %24 = arith.maximumf %22, %23 : vector<216x32xf32>
    %c0_20 = arith.constant 0 : index
    %c0_21 = arith.constant 0 : index
    %25 = vector.load %arg8[%c0_20, %c0_21] : memref<32x3xf32, #tpu.memory_space<vmem>>, vector<32x3xf32>
    %cst_22 = arith.constant dense<0.000000e+00> : vector<216x3xf32>
    %26 = tpu.matmul %24, %25, %cst_22 {dimension_numbers = #tpu.dot_dimension_numbers<[1], [0], [0], [1], [0, 0, 1, 1], [], []>} : vector<216x32xf32>, vector<32x3xf32>, vector<216x3xf32> -> vector<216x3xf32>
    %c2 = arith.constant 2 : index
    %c0_23 = arith.constant 0 : index
    %27 = vector.load %arg9[%c2, %c0_23] : memref<3x128xf32, #tpu.memory_space<vmem>>, vector<1x3xf32>
    %28 = vector.broadcast %27 : vector<1x3xf32> to vector<216x3xf32>
    %29 = arith.addf %26, %28 : vector<216x3xf32>
    %c0_24 = arith.constant 0 : index
    %c0_25 = arith.constant 0 : index
    %c0_26 = arith.constant 0 : index
    %30 = vector.load %arg10[%c0_24, %c0_25, %c0_26] : memref<1x216x3xf32, #tpu.memory_space<vmem>>, vector<1x216x3xf32>
    %31 = vector.shape_cast %30 : vector<1x216x3xf32> to vector<216x3xf32>
    %32 = vector.shape_cast %29 : vector<216x3xf32> to vector<1x216x3xf32>
    tpu.vector_store %arg10[%c0_24, %c0_25, %c0_26], %32 {strides = array<i32>} : memref<1x216x3xf32, #tpu.memory_space<vmem>>, vector<1x216x3xf32>,
    return
  }
  func.func @transform_0(%arg0: i32, %arg1: i32) -> (i32, i32) {
    %c0_i32 = arith.constant 0 : i32
    %c0_i32_0 = arith.constant 0 : i32
    return %arg1, %c0_i32 : i32, i32
  }
  func.func @transform_1(%arg0: i32, %arg1: i32) -> (i32, i32, i32) {
    %c0_i32 = arith.constant 0 : i32
    %c0_i32_0 = arith.constant 0 : i32
    %c0_i32_1 = arith.constant 0 : i32
    return %arg0, %c0_i32, %c0_i32_0 : i32, i32, i32
  }
  func.func @transform_2(%arg0: i32, %arg1: i32) -> (i32, i32) {
    %c0_i32 = arith.constant 0 : i32
    %c0_i32_0 = arith.constant 0 : i32
    %c0_i32_1 = arith.constant 0 : i32
    return %c0_i32, %c0_i32_0 : i32, i32
  }
  func.func @transform_3(%arg0: i32, %arg1: i32) -> (i32, i32) {
    %c0_i32 = arith.constant 0 : i32
    %c0_i32_0 = arith.constant 0 : i32
    %c0_i32_1 = arith.constant 0 : i32
    return %c0_i32, %c0_i32_0 : i32, i32
  }
  func.func @transform_4(%arg0: i32, %arg1: i32) -> (i32, i32) {
    %c0_i32 = arith.constant 0 : i32
    %c0_i32_0 = arith.constant 0 : i32
    %c0_i32_1 = arith.constant 0 : i32
    return %c0_i32, %c0_i32_0 : i32, i32
  }
  func.func @transform_5(%arg0: i32, %arg1: i32) -> (i32, i32) {
    %c0_i32 = arith.constant 0 : i32
    %c0_i32_0 = arith.constant 0 : i32
    %c0_i32_1 = arith.constant 0 : i32
    return %c0_i32, %c0_i32_0 : i32, i32
  }
  func.func @transform_6(%arg0: i32, %arg1: i32) -> (i32, i32) {
    %c0_i32 = arith.constant 0 : i32
    %c0_i32_0 = arith.constant 0 : i32
    %c0_i32_1 = arith.constant 0 : i32
    return %c0_i32, %c0_i32_0 : i32, i32
  }
  func.func @transform_7(%arg0: i32, %arg1: i32) -> (i32, i32) {
    %c0_i32 = arith.constant 0 : i32
    %c0_i32_0 = arith.constant 0 : i32
    %c0_i32_1 = arith.constant 0 : i32
    return %c0_i32, %c0_i32_0 : i32, i32
  }
  func.func @transform_8(%arg0: i32, %arg1: i32) -> (i32, i32, i32) {
    %c0_i32 = arith.constant 0 : i32
    %c0_i32_0 = arith.constant 0 : i32
    return %arg0, %arg1, %c0_i32 : i32, i32, i32
  }
}

</mosaic_0001>

<llo_original>
// kernel: foldingnet_shapes_forward.2
$region0: #{foldingnet_shapes_forward.2}
  #allocation0 [shape = 'u32[]', space=smem, size = 0x4, offset = 0x4, fixed_abs, tag = 'smem constant byte address 0x4 - core index']
  #allocation1 [shape = 'u32[144,128]{1,0:T(1,128)}', space=vmem, size = 0x12000, scoped, tag = 'internal scratch']
  %s0 = inlined_call_operand.vmem [shape: f32[2,8,3], index: 0, kind: input, shape index: {}]
  %s1 = inlined_call_operand.hbm [shape: f32[3,32], index: 1, kind: input, shape index: {}]
  %s2 = inlined_call_operand.hbm [shape: f32[32,64], index: 2, kind: input, shape index: {}]
  %s3 = inlined_call_operand.vmem [shape: f32[64,32], index: 3, kind: input, shape index: {}]
  %s4 = inlined_call_operand.vmem [shape: f32[32,16], index: 4, kind: input, shape index: {}]
  %s5 = inlined_call_operand.hbm [shape: f32[4,128], index: 5, kind: input, shape index: {}]
  %s6 = inlined_call_operand.vmem [shape: f32[2,1,16], index: 6, kind: output, shape index: {}]
  %s7 = sld [smem:[#allocation0]]
  $region69: #{foldingnet_shapes_forward.2} parent=0
    _
  %s9 = ssub.s32 1, %s7
  %s10 = scalar_select 0, %s9, %s7
  $region1: #{foldingnet_shapes_forward.2} parent=0
    #allocation2 [shape = 'u8[2048]{0}', space=vmem, size = 0x800, scoped, tag = 'input window, operand 1, single buffered']
    #allocation3 [shape = 's32[2]{0}', space=sflag, size = 0x8, scoped, tag = 'scoped memory for foldingnet_shapes_forward.2']
    #allocation4 [shape = 'u8[16384]{0}', space=vmem, size = 0x4000, scoped, tag = 'input window, operand 2, single buffered']
    #allocation5 [shape = 's32[1]{0}', space=sflag, size = 0x4, scoped, tag = 'scoped memory for foldingnet_shapes_forward.2']
    #allocation6 [shape = 'u8[2048]{0}', space=vmem, size = 0x800, scoped, tag = 'input window, operand 5, single buffered']
    %11 = vsyncpa [#allocation3], 0
    %12 = vsyncpa [#allocation5], 0
    loop: start=0, step=1, limit=4
    $region2: #{foldingnet_shapes_forward.2} parent=1 // loop_pre_header
      _
    $region3: #{foldingnet_shapes_forward.2} parent=1 // loop_header
      %s14 = sphi 0, %s18
      %p15 = scmp.ge.s32.totalorder %s14, 4
      %s24 = sphi 0, %s26
      %s27 = sphi 0, %s24
      %s28 = sphi 0, %s27
      %s44 = sphi 0, %s28
      %s48 = sphi 0, %s48
      %s50 = sphi 0, %s48
      %s51 = sphi 0, %s50
      %s65 = sphi 0, %s51
      %s69 = sphi 0, %s69
      %s71 = sphi 0, %s69
      %s72 = sphi 0, %s71
      %s86 = sphi 0, %s72
      %s90 = sphi 0, %s90
      %s92 = sphi 0, %s90
      %s93 = sphi 0, %s92
      %s107 = sphi 0, %s93
      %s111 = sphi 0, %s111
      %s113 = sphi 0, %s111
      %s114 = sphi 0, %s113
      %s128 = sphi 0, %s114
      %s132 = sphi 0, %s132
      %s134 = sphi 0, %s132
      %s135 = sphi 0, %s134
      %s149 = sphi 0, %s135
      %s155 = sphi 0, %s157
      %s158 = sphi 0, %s155
      %s159 = sphi 0, %s158
      %s175 = sphi 0, %s159
    $region4: #{foldingnet_shapes_forward.2} parent=1 // loop_header_branch
      %17 = sbr.rel (%p15) target = $region8
    $region5: #{foldingnet_shapes_forward.2} parent=1 // loop_body
      %s19 = ssub.s32 %s14, 1
      %s20 = ssub.s32 %s14, 2
      %s21 = sadd.s32 %s14, 1
      %s22 = ssub.s32 %s14, %s21
      %p23 = scmp.eq.s32.totalorder %s22, 0
      %s25 = sadd.s32 %s24, 1
      %s26 = scalar_select %p23, %s24, %s25
      %p29 = pneg %p23
      %p30 = scmp.eq.s32.totalorder %s14, 1
      %p31 = por %p29, %p30
      %p32 = scmp.ne.s32.totalorder %s24, %s27
      %p33 = scmp.eq.s32.totalorder %s14, 0
      %p34 = por %p32, %p33
      %p35 = scmp.ne.s32.totalorder %s24, %s27
      %p36 = scmp.eq.s32.totalorder %s19, 1
      %p37 = por %p35, %p36
      %p38 = scmp.ne.s32.totalorder %s27, %s28
      %p39 = scmp.eq.s32.totalorder %s19, 0
      %p40 = por %p38, %p39
      %p41 = scmp.ne.s32.totalorder %s27, %s28
      %p42 = scmp.eq.s32.totalorder %s20, 1
      %p43 = por %p41, %p42
      %p45 = scmp.ne.s32.totalorder %s28, %s44
      %p46 = scmp.eq.s32.totalorder %s20, 0
      %p47 = por %p45, %p46
      %s49 = sadd.s32 %s48, 1
      %p52 = scmp.eq.s32.totalorder %s14, 1
      %p53 = scmp.ne.s32.totalorder %s48, %s50
      %p54 = scmp.eq.s32.totalorder %s14, 0
      %p55 = por %p53, %p54
      %p56 = scmp.ne.s32.totalorder %s48, %s50
      %p57 = scmp.eq.s32.totalorder %s19, 1
      %p58 = por %p56, %p57
      %p59 = scmp.ne.s32.totalorder %s50, %s51
      %p60 = scmp.eq.s32.totalorder %s19, 0
      %p61 = por %p59, %p60
      %p62 = scmp.ne.s32.totalorder %s50, %s51
      %p63 = scmp.eq.s32.totalorder %s20, 1
      %p64 = por %p62, %p63
      %p66 = scmp.ne.s32.totalorder %s51, %s65
      %p67 = scmp.eq.s32.totalorder %s20, 0
      %p68 = por %p66, %p67
      %s70 = sadd.s32 %s69, 1
      %p73 = scmp.eq.s32.totalorder %s14, 1
      %p74 = scmp.ne.s32.totalorder %s69, %s71
      %p75 = scmp.eq.s32.totalorder %s14, 0
      %p76 = por %p74, %p75
      %p77 = scmp.ne.s32.totalorder %s69, %s71
      %p78 = scmp.eq.s32.totalorder %s19, 1
      %p79 = por %p77, %p78
      %p80 = scmp.ne.s32.totalorder %s71, %s72
      %p81 = scmp.eq.s32.totalorder %s19, 0
      %p82 = por %p80, %p81
      %p83 = scmp.ne.s32.totalorder %s71, %s72
      %p84 = scmp.eq.s32.totalorder %s20, 1
      %p85 = por %p83, %p84
      %p87 = scmp.ne.s32.totalorder %s72, %s86
      %p88 = scmp.eq.s32.totalorder %s20, 0
      %p89 = por %p87, %p88
      %s91 = sadd.s32 %s90, 1
      %p94 = scmp.eq.s32.totalorder %s14, 1
      %p95 = scmp.ne.s32.totalorder %s90, %s92
      %p96 = scmp.eq.s32.totalorder %s14, 0
      %p97 = por %p95, %p96
      %p98 = scmp.ne.s32.totalorder %s90, %s92
      %p99 = scmp.eq.s32.totalorder %s19, 1
      %p100 = por %p98, %p99
      %p101 = scmp.ne.s32.totalorder %s92, %s93
      %p102 = scmp.eq.s32.totalorder %s19, 0
      %p103 = por %p101, %p102
      %p104 = scmp.ne.s32.totalorder %s92, %s93
      %p105 = scmp.eq.s32.totalorder %s20, 1
      %p106 = por %p104, %p105
      %p108 = scmp.ne.s32.totalorder %s93, %s107
      %p109 = scmp.eq.s32.totalorder %s20, 0
      %p110 = por %p108, %p109
      %s112 = sadd.s32 %s111, 1
      %p115 = scmp.eq.s32.totalorder %s14, 1
      %p116 = scmp.ne.s32.totalorder %s111, %s113
      %p117 = scmp.eq.s32.totalorder %s14, 0
      %p118 = por %p116, %p117
      %p119 = scmp.ne.s32.totalorder %s111, %s113
      %p120 = scmp.eq.s32.totalorder %s19, 1
      %p121 = por %p119, %p120
      %p122 = scmp.ne.s32.totalorder %s113, %s114
      %p123 = scmp.eq.s32.totalorder %s19, 0
      %p124 = por %p122, %p123
      %p125 = scmp.ne.s32.totalorder %s113, %s114
      %p126 = scmp.eq.s32.totalorder %s20, 1
      %p127 = por %p125, %p126
      %p129 = scmp.ne.s32.totalorder %s114, %s128
      %p130 = scmp.eq.s32.totalorder %s20, 0
      %p131 = por %p129, %p130
      %s133 = sadd.s32 %s132, 1
      %p136 = scmp.eq.s32.totalorder %s14, 1
      %p137 = scmp.ne.s32.totalorder %s132, %s134
      %p138 = scmp.eq.s32.totalorder %s14, 0
      %p139 = por %p137, %p138
      %p140 = scmp.ne.s32.totalorder %s132, %s134
      %p141 = scmp.eq.s32.totalorder %s19, 1
      %p142 = por %p140, %p141
      %p143 = scmp.ne.s32.totalorder %s134, %s135
      %p144 = scmp.eq.s32.totalorder %s19, 0
      %p145 = por %p143, %p144
      %p146 = scmp.ne.s32.totalorder %s134, %s135
      %p147 = scmp.eq.s32.totalorder %s20, 1
      %p148 = por %p146, %p147
      %p150 = scmp.ne.s32.totalorder %s135, %s149
      %p151 = scmp.eq.s32.totalorder %s20, 0
      %p152 = por %p150, %p151
      %s153 = ssub.s32 %s14, %s21
      %p154 = scmp.eq.s32.totalorder %s153, 0
      %s156 = sadd.s32 %s155, 1
      %s157 = scalar_select %p154, %s155, %s156
      %p160 = pneg %p154
      %p161 = scmp.eq.s32.totalorder %s14, 1
      %p162 = por %p160, %p161
      %p163 = scmp.ne.s32.totalorder %s155, %s158
      %p164 = scmp.eq.s32.totalorder %s14, 0
      %p165 = por %p163, %p164
      %p166 = scmp.ne.s32.totalorder %s155, %s158
      %p167 = scmp.eq.s32.totalorder %s19, 1
      %p168 = por %p166, %p167
      %p169 = scmp.ne.s32.totalorder %s158, %s159
      %p170 = scmp.eq.s32.totalorder %s19, 0
      %p171 = por %p169, %p170
      %p172 = scmp.ne.s32.totalorder %s158, %s159
      %p173 = scmp.eq.s32.totalorder %s20, 1
      %p174 = por %p172, %p173
      %p176 = scmp.ne.s32.totalorder %s159, %s175
      %p177 = scmp.eq.s32.totalorder %s20, 0
      %p178 = por %p176, %p177
      %p179 = scmp.le.s32.totalorder 1, %s14
      %p180 = scmp.lt.s32.totalorder %s14, 3
      %p181 = pnand %p179, %p180
      %p182 = pneg %p181
      // Predicated region
      $region9: #{foldingnet_shapes_forward.2} parent=5 // pred_check
        _
      $region10: #{foldingnet_shapes_forward.2} parent=5 // pred_check_branch
        %184 = sbr.rel (%p181) target = $region12
      $region11: #{foldingnet_shapes_forward.2} parent=5 // pred_region
        %s185 = ssub.s32 %s14, 1
        // Predicated region
        $region13: #{foldingnet_shapes_forward.2} parent=11 // pred_check
          %p186 = pneg %p61
        $region14: #{foldingnet_shapes_forward.2} parent=11 // pred_check_branch
          %188 = sbr.rel (%p186) target = $region16
        $region15: #{foldingnet_shapes_forward.2} parent=11 // pred_region
          %s190 = ssub.s32 64, 64
          %191 = vsyncadd [#allocation3], %s190
          %s193 = sshll.u32 [#allocation2], 4
          %s194 = int_to_ptr.vmem [resolvable:$true] %s193
          %196 = dma.hbm_to_vmem [thread:$0]  %s1, 64, %s194, [#allocation3]
        $region16: #{foldingnet_shapes_forward.2} parent=11 // pred_fallthru
          _
        // Predicated region
        $region17: #{foldingnet_shapes_forward.2} parent=11 // pred_check
          %p197 = pneg %p82
        $region18: #{foldingnet_shapes_forward.2} parent=11 // pred_check_branch
          %199 = sbr.rel (%p197) target = $region20
        $region19: #{foldingnet_shapes_forward.2} parent=11 // pred_region
          %s201 = ssub.s32 512, 512
          %202 = vsyncadd [#allocation5], %s201
          %s203 = sshll.u32 [#allocation4], 4
          %s204 = int_to_ptr.vmem [resolvable:$true] %s203
          %209 = dma.hbm_to_vmem [thread:$0]  %s2, 512, %s204, [#allocation5], 128, 128, 8
        $region20: #{foldingnet_shapes_forward.2} parent=11 // pred_fallthru
          _
        // Predicated region
        $region21: #{foldingnet_shapes_forward.2} parent=11 // pred_check
          %p210 = pneg %p103
        $region22: #{foldingnet_shapes_forward.2} parent=11 // pred_check_branch
          %212 = sbr.rel (%p210) target = $region24
        $region23: #{foldingnet_shapes_forward.2} parent=11 // pred_region
          _
        $region24: #{foldingnet_shapes_forward.2} parent=11 // pred_fallthru
          _
        // Predicated region
        $region25: #{foldingnet_shapes_forward.2} parent=11 // pred_check
          %p213 = pneg %p124
        $region26: #{foldingnet_shapes_forward.2} parent=11 // pred_check_branch
          %215 = sbr.rel (%p213) target = $region28
        $region27: #{foldingnet_shapes_forward.2} parent=11 // pred_region
          _
        $region28: #{foldingnet_shapes_forward.2} parent=11 // pred_fallthru
          _
        // Predicated region
        $region29: #{foldingnet_shapes_forward.2} parent=11 // pred_check
          %p216 = pneg %p145
        $region30: #{foldingnet_shapes_forward.2} parent=11 // pred_check_branch
          %218 = sbr.rel (%p216) target = $region32
        $region31: #{foldingnet_shapes_forward.2} parent=11 // pred_region
          %s220 = ssub.s32 64, 64
          %221 = vsyncadd [#allocation5], %s220
          %s223 = sshll.u32 [#allocation6], 4
          %s224 = int_to_ptr.vmem [resolvable:$true] %s223
          %226 = dma.hbm_to_vmem [thread:$0]  %s5, 64, %s224, [#allocation5]
        $region32: #{foldingnet_shapes_forward.2} parent=11 // pred_fallthru
          _
      $region12: #{foldingnet_shapes_forward.2} parent=5 // pred_fallthru
        _
      %p227 = scmp.lt.s32.totalorder %s14, 2
      // Predicated region
      $region33: #{foldingnet_shapes_forward.2} parent=5 // pred_check
        %p228 = pneg %p227
      $region34: #{foldingnet_shapes_forward.2} parent=5 // pred_check_branch
        %230 = sbr.rel (%p228) target = $region36
      $region35: #{foldingnet_shapes_forward.2} parent=5 // pred_region
        // Predicated region
        $region37: #{foldingnet_shapes_forward.2} parent=35 // pred_check
          %p231 = pneg %p34
        $region38: #{foldingnet_shapes_forward.2} parent=35 // pred_check_branch
          %233 = sbr.rel (%p231) target = $region40
        $region39: #{foldingnet_shapes_forward.2} parent=35 // pred_region
          %p234 = scmp.lt.s32.totalorder %s14, 1
          %s235 = scalar_select %p234, %s14, 1
          %s236 = smul.addr %s235, 8
          %s237 = scalar_lea.vmem %s0, %s236
        $region40: #{foldingnet_shapes_forward.2} parent=35 // pred_fallthru
          _
      $region36: #{foldingnet_shapes_forward.2} parent=5 // pred_fallthru
        _
      %p238 = scmp.le.s32.totalorder 1, %s14
      %p239 = scmp.lt.s32.totalorder %s14, 3
      %p240 = pnand %p238, %p239
      %p241 = pneg %p240
      // Predicated region
      $region41: #{foldingnet_shapes_forward.2} parent=5 // pred_check
        _
      $region42: #{foldingnet_shapes_forward.2} parent=5 // pred_check_branch
        %243 = sbr.rel (%p240) target = $region44
      $region43: #{foldingnet_shapes_forward.2} parent=5 // pred_region
        %s244 = ssub.s32 %s14, 1
        // Predicated region
        $region45: #{foldingnet_shapes_forward.2} parent=43 // pred_check
          %p245 = pneg %p61
        $region46: #{foldingnet_shapes_forward.2} parent=43 // pred_check_branch
          %247 = sbr.rel (%p245) target = $region48
        $region47: #{foldingnet_shapes_forward.2} parent=43 // pred_region
          %248 = dma.done [#allocation3], 64
        $region48: #{foldingnet_shapes_forward.2} parent=43 // pred_fallthru
          _
        // Predicated region
        $region49: #{foldingnet_shapes_forward.2} parent=43 // pred_check
          %p249 = pneg %p82
        $region50: #{foldingnet_shapes_forward.2} parent=43 // pred_check_branch
          %251 = sbr.rel (%p249) target = $region52
        $region51: #{foldingnet_shapes_forward.2} parent=43 // pred_region
          %252 = dma.done [#allocation5], 512
        $region52: #{foldingnet_shapes_forward.2} parent=43 // pred_fallthru
          _
        // Predicated region
        $region53: #{foldingnet_shapes_forward.2} parent=43 // pred_check
          %p253 = pneg %p145
        $region54: #{foldingnet_shapes_forward.2} parent=43 // pred_check_branch
          %255 = sbr.rel (%p253) target = $region56
        $region55: #{foldingnet_shapes_forward.2} parent=43 // pred_region
          %256 = dma.done [#allocation5], 64
        $region56: #{foldingnet_shapes_forward.2} parent=43 // pred_fallthru
          _
        %p257 = scmp.lt.s32.totalorder %s19, 1
        %s258 = scalar_select %p257, %s19, 1
        %s259 = smul.addr %s258, 8
        %s260 = scalar_lea.vmem %s0, %s259
        %p261 = pneg %p40
        %p262 = pneg %p37
        %p263 = pneg %p61
        %p264 = pneg %p58
        %p265 = pneg %p82
        %p266 = pneg %p79
        %p267 = pneg %p103
        %p268 = pneg %p100
        %p269 = pneg %p124
        %p270 = pneg %p121
        %p271 = pneg %p145
        %p272 = pneg %p142
        %p273 = pneg %p171
        %p274 = pneg %p168
        %p275 = scmp.lt.s32.totalorder %s19, 1
        %s276 = scalar_select %p275, %s19, 1
        %s277 = scalar_lea.vmem %s6, %s276
        %p278 = scmp.lt.s32.totalorder %s19, 1
        %s279 = scalar_select %p278, %s19, 1
        %s280 = smul.addr %s279, 8
        %s281 = scalar_lea.vmem %s0, %s280
        %p282 = scmp.lt.s32.totalorder %s19, 1
        %s283 = scalar_select %p282, %s19, 1
        %s284 = scalar_lea.vmem %s6, %s283
        %v285 = vld [vmem:[%s281] sm:$0xff]
        %v286 = vld [vmem:[#allocation2] sm:$0x7]
        %v287 = vld [vmem:[#allocation6] sm:$0x1]
        %289 = vset.pattern.permute.xlu0 0
        %290 = vperm.xlu0 %289, %v285
        %v291 = vpop.permute.xlu0 %290
        %v293 = vlaneseq
        %v294 = vshrl.u32 %v293, 7
        %v295 = vsub.s32 0, %v294
        %v296 = vrot.slane %v286, %v295
        %v297 = vmul.f32 %v291, %v296
        %v298 = vlaneseq
        %v299 = vshrl.u32 %v298, 7
        %v300 = vsub.s32 0, %v299
        %v301 = vrot.slane %v287, %v300
        %v302 = vadd.f32 %v301, %v297
        %303 = vset.pattern.permute.xlu0 1
        %304 = vperm.xlu0 %303, %v285
        %v305 = vpop.permute.xlu0 %304
        %v307 = vlaneseq
        %v308 = vshrl.u32 %v307, 7
        %v309 = vsub.s32 1, %v308
        %v310 = vrot.slane %v286, %v309
        %v311 = vmul.f32 %v305, %v310
        %v312 = vadd.f32 %v302, %v311
        %313 = vset.pattern.permute.xlu0 2
        %314 = vperm.xlu0 %313, %v285
        %v315 = vpop.permute.xlu0 %314
        %v317 = vlaneseq
        %v318 = vshrl.u32 %v317, 7
        %v319 = vsub.s32 2, %v318
        %v320 = vrot.slane %v286, %v319
        %v321 = vmul.f32 %v315, %v320
        %v322 = vadd.f32 %v312, %v321
        %v323 = vmax.f32 %v322, 0.0
        %v324 = vld [vmem:[#allocation4] sm:$0xff]
        %v325 = vld [vmem:[#allocation4 + $0x8] sm:$0xff]
        %v326 = vld [vmem:[#allocation4 + $0x10] sm:$0xff]
        %v327 = vld [vmem:[#allocation4 + $0x18] sm:$0xff]
        %v328 = vld [vmem:[#allocation6 + $0x1] sm:$0x1]
        %v329 = vlaneseq
        %v330 = vshrl.u32 %v329, 7
        %v331 = vsub.s32 0, %v330
        %v332 = vrot.slane %v328, %v331
        %vm333 = vcmask 261120
        %v335 = vsel %vm333, %v323, 0
        %337 = vmatprep.subr.mxu0 0.0
        %338 = vmatpush1.msra.mxu0 %v324
        %339 = vmatprep.subr.mxu0 0.0
        %340 = vmatpush1.msra.mxu0 %v325
        %341 = vmatprep.subr.mxu0 0.0
        %342 = vmatpush1.msra.mxu0 %v326
        %343 = vmatprep.subr.mxu0 0.0
        %344 = vmatpush1.msra.mxu0 %v327
        %345 = vmatprep.subr.mxu0 0.0
        %346 = vmatpush1.msra.mxu0 0.0
        %347 = vmatprep.subr.mxu0 0.0
        %348 = vmatpush1.msra.mxu0 0.0
        %349 = vmatprep.subr.mxu0 0.0
        %350 = vmatpush1.msra.mxu0 0.0
        %351 = vmatprep.subr.mxu0 0.0
        %352 = vmatpush1.msra.mxu0 0.0
        %353 = vmatprep.subr.mxu0 0.0
        %354 = vmatpush1.msra.mxu0 0.0
        %355 = vmatprep.subr.mxu0 0.0
        %356 = vmatpush1.msra.mxu0 0.0
        %357 = vmatprep.subr.mxu0 0.0
        %358 = vmatpush1.msra.mxu0 0.0
        %359 = vmatprep.subr.mxu0 0.0
        %360 = vmatpush1.msra.mxu0 0.0
        %361 = vmatprep.subr.mxu0 0.0
        %362 = vmatpush1.msra.mxu0 0.0
        %363 = vmatprep.subr.mxu0 0.0
        %364 = vmatpush1.msra.mxu0 0.0
        %365 = vmatprep.subr.mxu0 0.0
        %366 = vmatpush1.msra.mxu0 0.0
        %367 = vmatprep.subr.mxu0 0.0
        %368 = vmatpush1.msra.mxu0 0.0
        %369 = vmatprep.subr.mxu0 0.0
        %370 = vmatpush1.msra.mxu0 0.0
        %371 = vmatprep.subr.mxu0 0.0
        %372 = vmatpush1.msra.mxu0 0.0
        %373 = vmatprep.subr.mxu0 0.0
        %374 = vmatpush1.msra.mxu0 0.0
        %375 = vmatprep.subr.mxu0 0.0
        %376 = vmatpush1.msra.mxu0 0.0
        %377 = vmatprep.subr.mxu0 0.0
        %378 = vmatpush1.msra.mxu0 0.0
        %379 = vmatprep.subr.mxu0 0.0
        %380 = vmatpush1.msra.mxu0 0.0
        %381 = vmatprep.subr.mxu0 0.0
        %382 = vmatpush1.msra.mxu0 0.0
        %383 = vmatprep.subr.mxu0 0.0
        %384 = vmatpush1.msra.mxu0 0.0
        %385 = vmatprep.subr.mxu0 0.0
        %386 = vmatpush1.msra.mxu0 0.0
        %387 = vmatprep.subr.mxu0 0.0
        %388 = vmatpush1.msra.mxu0 0.0
        %389 = vmatprep.subr.mxu0 0.0
        %390 = vmatpush1.msra.mxu0 0.0
        %391 = vmatprep.subr.mxu0 0.0
        %392 = vmatpush1.msra.mxu0 0.0
        %393 = vmatprep.subr.mxu0 0.0
        %394 = vmatpush1.msra.mxu0 0.0
        %395 = vmatprep.subr.mxu0 0.0
        %396 = vmatpush1.msra.mxu0 0.0
        %397 = vmatprep.subr.mxu0 0.0
        %398 = vmatpush1.msra.mxu0 0.0
        %399 = vmatprep.subr.mxu0 0.0
        %400 = vmatpush1.msra.mxu0 0.0
        %401 = vmatprep.mubr.f32.mxu0 0.0
        %402 = vmatmul.mubr.f32.gmra.mrb[0].mxu0 %v335
        %v403 = vpop.f32.mrb[0].mxu0
        %v404 = vadd.f32 %v332, %v403
        %v405 = vpop.f32.mrb[0].mxu0
        %406 = vdwg.mxu0
        %vm407 = vcmask 523264
        %v408 = vsel %vm407, %v404, -inf
        %v409 = vrot.slane %v408, 4
        %v410 = vmax.f32 %v408, %v409
        %v411 = vrot.slane %v410, 2
        %v412 = vmax.f32 %v410, %v411
        %v413 = vrot.slane %v412, 1
        %v414 = vmax.f32 %v412, %v413
        %v415 = vld [vmem:[%s3] sm:$0xff]
        %v416 = vld [vmem:[%s3 + $0x8] sm:$0xff]
        %v417 = vld [vmem:[%s3 + $0x10] sm:$0xff]
        %v418 = vld [vmem:[%s3 + $0x18] sm:$0xff]
        %v419 = vld [vmem:[%s3 + $0x20] sm:$0xff]
        %v420 = vld [vmem:[%s3 + $0x28] sm:$0xff]
        %v421 = vld [vmem:[%s3 + $0x30] sm:$0xff]
        %v422 = vld [vmem:[%s3 + $0x38] sm:$0xff]
        %v423 = vld [vmem:[#allocation6 + $0x2] sm:$0x1]
        %v425 = vsel %vm407, %v414, 0
        %427 = vmatprep.subr.mxu0 0.0
        %428 = vmatpush1.msra.mxu0 %v415
        %429 = vmatprep.subr.mxu0 0.0
        %430 = vmatpush1.msra.mxu0 %v416
        %431 = vmatprep.subr.mxu0 0.0
        %432 = vmatpush1.msra.mxu0 %v417
        %433 = vmatprep.subr.mxu0 0.0
        %434 = vmatpush1.msra.mxu0 %v418
        %435 = vmatprep.subr.mxu0 0.0
        %436 = vmatpush1.msra.mxu0 %v419
        %437 = vmatprep.subr.mxu0 0.0
        %438 = vmatpush1.msra.mxu0 %v420
        %439 = vmatprep.subr.mxu0 0.0
        %440 = vmatpush1.msra.mxu0 %v421
        %441 = vmatprep.subr.mxu0 0.0
        %442 = vmatpush1.msra.mxu0 %v422
        %443 = vmatprep.subr.mxu0 0.0
        %444 = vmatpush1.msra.mxu0 0.0
        %445 = vmatprep.subr.mxu0 0.0
        %446 = vmatpush1.msra.mxu0 0.0
        %447 = vmatprep.subr.mxu0 0.0
        %448 = vmatpush1.msra.mxu0 0.0
        %449 = vmatprep.subr.mxu0 0.0
        %450 = vmatpush1.msra.mxu0 0.0
        %451 = vmatprep.subr.mxu0 0.0
        %452 = vmatpush1.msra.mxu0 0.0
        %453 = vmatprep.subr.mxu0 0.0
        %454 = vmatpush1.msra.mxu0 0.0
        %455 = vmatprep.subr.mxu0 0.0
        %456 = vmatpush1.msra.mxu0 0.0
        %457 = vmatprep.subr.mxu0 0.0
        %458 = vmatpush1.msra.mxu0 0.0
        %459 = vmatprep.subr.mxu0 0.0
        %460 = vmatpush1.msra.mxu0 0.0
        %461 = vmatprep.subr.mxu0 0.0
        %462 = vmatpush1.msra.mxu0 0.0
        %463 = vmatprep.subr.mxu0 0.0
        %464 = vmatpush1.msra.mxu0 0.0
        %465 = vmatprep.subr.mxu0 0.0
        %466 = vmatpush1.msra.mxu0 0.0
        %467 = vmatprep.subr.mxu0 0.0
        %468 = vmatpush1.msra.mxu0 0.0
        %469 = vmatprep.subr.mxu0 0.0
        %470 = vmatpush1.msra.mxu0 0.0
        %471 = vmatprep.subr.mxu0 0.0
        %472 = vmatpush1.msra.mxu0 0.0
        %473 = vmatprep.subr.mxu0 0.0
        %474 = vmatpush1.msra.mxu0 0.0
        %475 = vmatprep.subr.mxu0 0.0
        %476 = vmatpush1.msra.mxu0 0.0
        %477 = vmatprep.subr.mxu0 0.0
        %478 = vmatpush1.msra.mxu0 0.0
        %479 = vmatprep.subr.mxu0 0.0
        %480 = vmatpush1.msra.mxu0 0.0
        %481 = vmatprep.subr.mxu0 0.0
        %482 = vmatpush1.msra.mxu0 0.0
        %483 = vmatprep.subr.mxu0 0.0
        %484 = vmatpush1.msra.mxu0 0.0
        %485 = vmatprep.subr.mxu0 0.0
        %486 = vmatpush1.msra.mxu0 0.0
        %487 = vmatprep.subr.mxu0 0.0
        %488 = vmatpush1.msra.mxu0 0.0
        %489 = vmatprep.subr.mxu0 0.0
        %490 = vmatpush1.msra.mxu0 0.0
        %491 = vmatprep.mubr.f32.mxu0 0.0
        %492 = vmatmul.mubr.f32.gmra.mrb[0].mxu0 %v425
        %v493 = vpop.f32.mrb[0].mxu0
        %v494 = vadd.f32 %v423, %v493
        %v495 = vpop.f32.mrb[0].mxu0
        %496 = vdwg.mxu0
        %v497 = vmax.f32 %v494, 0.0
        %v498 = vld [vmem:[%s4] sm:$0xff]
        %v499 = vld [vmem:[%s4 + $0x8] sm:$0xff]
        %v500 = vld [vmem:[%s4 + $0x10] sm:$0xff]
        %v501 = vld [vmem:[%s4 + $0x18] sm:$0xff]
        %v502 = vld [vmem:[#allocation6 + $0x3] sm:$0x1]
        %v504 = vsel %vm333, %v497, 0
        %506 = vmatprep.subr.mxu0 0.0
        %507 = vmatpush1.msra.mxu0 %v498
        %508 = vmatprep.subr.mxu0 0.0
        %509 = vmatpush1.msra.mxu0 %v499
        %510 = vmatprep.subr.mxu0 0.0
        %511 = vmatpush1.msra.mxu0 %v500
        %512 = vmatprep.subr.mxu0 0.0
        %513 = vmatpush1.msra.mxu0 %v501
        %514 = vmatprep.subr.mxu0 0.0
        %515 = vmatpush1.msra.mxu0 0.0
        %516 = vmatprep.subr.mxu0 0.0
        %517 = vmatpush1.msra.mxu0 0.0
        %518 = vmatprep.subr.mxu0 0.0
        %519 = vmatpush1.msra.mxu0 0.0
        %520 = vmatprep.subr.mxu0 0.0
        %521 = vmatpush1.msra.mxu0 0.0
        %522 = vmatprep.subr.mxu0 0.0
        %523 = vmatpush1.msra.mxu0 0.0
        %524 = vmatprep.subr.mxu0 0.0
        %525 = vmatpush1.msra.mxu0 0.0
        %526 = vmatprep.subr.mxu0 0.0
        %527 = vmatpush1.msra.mxu0 0.0
        %528 = vmatprep.subr.mxu0 0.0
        %529 = vmatpush1.msra.mxu0 0.0
        %530 = vmatprep.subr.mxu0 0.0
        %531 = vmatpush1.msra.mxu0 0.0
        %532 = vmatprep.subr.mxu0 0.0
        %533 = vmatpush1.msra.mxu0 0.0
        %534 = vmatprep.subr.mxu0 0.0
        %535 = vmatpush1.msra.mxu0 0.0
        %536 = vmatprep.subr.mxu0 0.0
        %537 = vmatpush1.msra.mxu0 0.0
        %538 = vmatprep.subr.mxu0 0.0
        %539 = vmatpush1.msra.mxu0 0.0
        %540 = vmatprep.subr.mxu0 0.0
        %541 = vmatpush1.msra.mxu0 0.0
        %542 = vmatprep.subr.mxu0 0.0
        %543 = vmatpush1.msra.mxu0 0.0
        %544 = vmatprep.subr.mxu0 0.0
        %545 = vmatpush1.msra.mxu0 0.0
        %546 = vmatprep.subr.mxu0 0.0
        %547 = vmatpush1.msra.mxu0 0.0
        %548 = vmatprep.subr.mxu0 0.0
        %549 = vmatpush1.msra.mxu0 0.0
        %550 = vmatprep.subr.mxu0 0.0
        %551 = vmatpush1.msra.mxu0 0.0
        %552 = vmatprep.subr.mxu0 0.0
        %553 = vmatpush1.msra.mxu0 0.0
        %554 = vmatprep.subr.mxu0 0.0
        %555 = vmatpush1.msra.mxu0 0.0
        %556 = vmatprep.subr.mxu0 0.0
        %557 = vmatpush1.msra.mxu0 0.0
        %558 = vmatprep.subr.mxu0 0.0
        %559 = vmatpush1.msra.mxu0 0.0
        %560 = vmatprep.subr.mxu0 0.0
        %561 = vmatpush1.msra.mxu0 0.0
        %562 = vmatprep.subr.mxu0 0.0
        %563 = vmatpush1.msra.mxu0 0.0
        %564 = vmatprep.subr.mxu0 0.0
        %565 = vmatpush1.msra.mxu0 0.0
        %566 = vmatprep.subr.mxu0 0.0
        %567 = vmatpush1.msra.mxu0 0.0
        %568 = vmatprep.subr.mxu0 0.0
        %569 = vmatpush1.msra.mxu0 0.0
        %570 = vmatprep.mubr.f32.mxu0 0.0
        %571 = vmatmul.mubr.f32.gmra.mrb[0].mxu0 %v504
        %v572 = vpop.f32.mrb[0].mxu0
        %v573 = vadd.f32 %v502, %v572
        %v574 = vpop.f32.mrb[0].mxu0
        %575 = vdwg.mxu0
        %vm576 = vcmask 122880
        %577 = vst.msk [vmem:[%s284] sm:$0x1] %vm576, %v573
        %p578 = scmp.lt.s32.totalorder %s19, 1
        %s579 = scalar_select %p578, %s19, 1
        %s580 = scalar_lea.vmem %s6, %s579
        // Predicated region
        $region57: #{foldingnet_shapes_forward.2} parent=43 // pred_check
          %p581 = pneg %p168
        $region58: #{foldingnet_shapes_forward.2} parent=43 // pred_check_branch
          %583 = sbr.rel (%p581) target = $region60
        $region59: #{foldingnet_shapes_forward.2} parent=43 // pred_region
          _
        $region60: #{foldingnet_shapes_forward.2} parent=43 // pred_fallthru
          _
      $region44: #{foldingnet_shapes_forward.2} parent=5 // pred_fallthru
        _
      %p584 = scmp.le.s32.totalorder 2, %s14
      // Predicated region
      $region61: #{foldingnet_shapes_forward.2} parent=5 // pred_check
        %p585 = pneg %p584
      $region62: #{foldingnet_shapes_forward.2} parent=5 // pred_check_branch
        %587 = sbr.rel (%p585) target = $region64
      $region63: #{foldingnet_shapes_forward.2} parent=5 // pred_region
        %s588 = ssub.s32 %s14, 2
        // Predicated region
        $region65: #{foldingnet_shapes_forward.2} parent=63 // pred_check
          %p589 = pneg %p174
        $region66: #{foldingnet_shapes_forward.2} parent=63 // pred_check_branch
          %591 = sbr.rel (%p589) target = $region68
        $region67: #{foldingnet_shapes_forward.2} parent=63 // pred_region
          %p592 = scmp.lt.s32.totalorder %s20, 1
          %s593 = scalar_select %p592, %s20, 1
          %s594 = scalar_lea.vmem %s6, %s593
        $region68: #{foldingnet_shapes_forward.2} parent=63 // pred_fallthru
          _
      $region64: #{foldingnet_shapes_forward.2} parent=5 // pred_fallthru
        _
    $region6: #{foldingnet_shapes_forward.2} parent=1 // loop_footer
      %s18 = sadd.s32 1, %s14
    $region7: #{foldingnet_shapes_forward.2} parent=1 // loop_footer_branch
      %13 = sbr.rel target = $region3
    $region8: #{foldingnet_shapes_forward.2} parent=1 // loop_exit
      _
    %595 = vsyncpa [#allocation3], 1
    %s596 = scalar_lea.sflag [#allocation3], 1
    %597 = vsyncpa %s596, 1
    %598 = vsyncpa [#allocation5], 1

// kernel: foldingnet_shapes_forward.3
$region0: #{foldingnet_shapes_forward.3}
  #allocation0 [shape = 'u32[]', space=smem, size = 0x4, offset = 0x4, fixed_abs, tag = 'smem constant byte address 0x4 - core index']
  #allocation1 [shape = 'u32[144,128]{1,0:T(1,128)}', space=vmem, size = 0x12000, scoped, tag = 'internal scratch']
  %s0 = inlined_call_operand.vmem [shape: f32[1944,32], index: 0, kind: input, shape index: {}]
  %s1 = inlined_call_operand.vmem [shape: f32[2,1,16], index: 1, kind: input, shape index: {}]
  %s2 = inlined_call_operand.hbm [shape: f32[16,32], index: 2, kind: input, shape index: {}]
  %s3 = inlined_call_operand.vmem [shape: f32[32,8], index: 3, kind: input, shape index: {}]
  %s4 = inlined_call_operand.hbm [shape: f32[8,32], index: 4, kind: input, shape index: {}]
  %s5 = inlined_call_operand.hbm [shape: f32[16,32], index: 5, kind: input, shape index: {}]
  %s6 = inlined_call_operand.vmem [shape: f32[32,3], index: 6, kind: input, shape index: {}]
  %s7 = inlined_call_operand.hbm [shape: f32[3,128], index: 7, kind: input, shape index: {}]
  %s8 = inlined_call_operand.vmem [shape: f32[2,1944,3], index: 8, kind: output, shape index: {}]
  %s9 = sld [smem:[#allocation0]]
  $region81: #{foldingnet_shapes_forward.3} parent=0
    _
  %s11 = ssub.s32 1, %s9
  %s12 = scalar_select 0, %s11, %s9
  $region1: #{foldingnet_shapes_forward.3} parent=0
    #allocation2 [shape = 'u8[8192]{0}', space=vmem, size = 0x2000, scoped, tag = 'input window, operand 2, single buffered']
    #allocation3 [shape = 's32[2]{0}', space=sflag, size = 0x8, scoped, tag = 'scoped memory for foldingnet_shapes_forward.3']
    #allocation4 [shape = 'u8[4096]{0}', space=vmem, size = 0x1000, scoped, tag = 'input window, operand 4, single buffered']
    #allocation5 [shape = 's32[1]{0}', space=sflag, size = 0x4, scoped, tag = 'scoped memory for foldingnet_shapes_forward.3']
    #allocation6 [shape = 'u8[8192]{0}', space=vmem, size = 0x2000, scoped, tag = 'input window, operand 5, single buffered']
    #allocation7 [shape = 'u8[2048]{0}', space=vmem, size = 0x800, scoped, tag = 'input window, operand 7, single buffered']
    #allocation8 [shape = 's32[1]{0}', space=sflag, size = 0x4, scoped, tag = 'scoped memory for foldingnet_shapes_forward.3']
    %13 = vsyncpa [#allocation3], 0
    %14 = vsyncpa [#allocation5], 0
    %15 = vsyncpa [#allocation8], 0
    loop: start=0, step=1, limit=20
    $region2: #{foldingnet_shapes_forward.3} parent=1 // loop_pre_header
      _
    $region3: #{foldingnet_shapes_forward.3} parent=1 // loop_header
      %s17 = sphi 0, %s21
      %p18 = scmp.ge.s32.totalorder %s17, 20
      %s24 = sphi 0, %s36
      %s25 = sphi 0, %s32
      %s26 = sphi 0, %s24
      %s27 = sphi 0, %s25
      %s28 = sphi 0, %s26
      %s29 = sphi 0, %s27
      %s39 = sphi 0, %s41
      %s42 = sphi 0, %s39
      %s43 = sphi 0, %s42
      %s59 = sphi 0, %s43
      %s65 = sphi 0, %s67
      %s68 = sphi 0, %s65
      %s69 = sphi 0, %s68
      %s85 = sphi 0, %s69
      %s89 = sphi 0, %s89
      %s91 = sphi 0, %s89
      %s92 = sphi 0, %s91
      %s106 = sphi 0, %s92
      %s110 = sphi 0, %s110
      %s112 = sphi 0, %s110
      %s113 = sphi 0, %s112
      %s127 = sphi 0, %s113
      %s131 = sphi 0, %s131
      %s133 = sphi 0, %s131
      %s134 = sphi 0, %s133
      %s148 = sphi 0, %s134
      %s152 = sphi 0, %s152
      %s154 = sphi 0, %s152
      %s155 = sphi 0, %s154
      %s169 = sphi 0, %s155
      %s173 = sphi 0, %s173
      %s175 = sphi 0, %s173
      %s176 = sphi 0, %s175
      %s190 = sphi 0, %s176
      %s194 = sphi 0, %s194
      %s196 = sphi 0, %s194
      %s197 = sphi 0, %s196
      %s211 = sphi 0, %s197
      %s219 = sphi 0, %s221
      %s222 = sphi 0, %s219
      %s223 = sphi 0, %s222
      %s239 = sphi 0, %s223
    $region4: #{foldingnet_shapes_forward.3} parent=1 // loop_header_branch
      %20 = sbr.rel (%p18) target = $region8
    $region5: #{foldingnet_shapes_forward.3} parent=1 // loop_body
      %s22 = ssub.s32 %s17, 1
      %s23 = ssub.s32 %s17, 2
      %s30 = sadd.s32 1, %s25
      %p31 = scmp.ge.s32.totalorder %s30, 9
      %s32 = scalar_select %p31, 0, %s30
      %s33 = sadd.s32 1, %s24
      %s34 = scalar_select %p31, %s33, %s24
      %p35 = scmp.ge.s32.totalorder %s34, 2
      %s36 = scalar_select %p35, 0, %s34
      %s37 = ssub.s32 %s25, %s32
      %p38 = scmp.eq.s32.totalorder %s37, 0
      %s40 = sadd.s32 %s39, 1
      %s41 = scalar_select %p38, %s39, %s40
      %p44 = pneg %p38
      %p45 = scmp.eq.s32.totalorder %s17, 17
      %p46 = por %p44, %p45
      %p47 = scmp.ne.s32.totalorder %s39, %s42
      %p48 = scmp.eq.s32.totalorder %s17, 0
      %p49 = por %p47, %p48
      %p50 = scmp.ne.s32.totalorder %s39, %s42
      %p51 = scmp.eq.s32.totalorder %s22, 17
      %p52 = por %p50, %p51
      %p53 = scmp.ne.s32.totalorder %s42, %s43
      %p54 = scmp.eq.s32.totalorder %s22, 0
      %p55 = por %p53, %p54
      %p56 = scmp.ne.s32.totalorder %s42, %s43
      %p57 = scmp.eq.s32.totalorder %s23, 17
      %p58 = por %p56, %p57
      %p60 = scmp.ne.s32.totalorder %s43, %s59
      %p61 = scmp.eq.s32.totalorder %s23, 0
      %p62 = por %p60, %p61
      %s63 = ssub.s32 %s24, %s36
      %p64 = scmp.eq.s32.totalorder %s63, 0
      %s66 = sadd.s32 %s65, 1
      %s67 = scalar_select %p64, %s65, %s66
      %p70 = pneg %p64
      %p71 = scmp.eq.s32.totalorder %s17, 17
      %p72 = por %p70, %p71
      %p73 = scmp.ne.s32.totalorder %s65, %s68
      %p74 = scmp.eq.s32.totalorder %s17, 0
      %p75 = por %p73, %p74
      %p76 = scmp.ne.s32.totalorder %s65, %s68
      %p77 = scmp.eq.s32.totalorder %s22, 17
      %p78 = por %p76, %p77
      %p79 = scmp.ne.s32.totalorder %s68, %s69
      %p80 = scmp.eq.s32.totalorder %s22, 0
      %p81 = por %p79, %p80
      %p82 = scmp.ne.s32.totalorder %s68, %s69
      %p83 = scmp.eq.s32.totalorder %s23, 17
      %p84 = por %p82, %p83
      %p86 = scmp.ne.s32.totalorder %s69, %s85
      %p87 = scmp.eq.s32.totalorder %s23, 0
      %p88 = por %p86, %p87
      %s90 = sadd.s32 %s89, 1
      %p93 = scmp.eq.s32.totalorder %s17, 17
      %p94 = scmp.ne.s32.totalorder %s89, %s91
      %p95 = scmp.eq.s32.totalorder %s17, 0
      %p96 = por %p94, %p95
      %p97 = scmp.ne.s32.totalorder %s89, %s91
      %p98 = scmp.eq.s32.totalorder %s22, 17
      %p99 = por %p97, %p98
      %p100 = scmp.ne.s32.totalorder %s91, %s92
      %p101 = scmp.eq.s32.totalorder %s22, 0
      %p102 = por %p100, %p101
      %p103 = scmp.ne.s32.totalorder %s91, %s92
      %p104 = scmp.eq.s32.totalorder %s23, 17
      %p105 = por %p103, %p104
      %p107 = scmp.ne.s32.totalorder %s92, %s106
      %p108 = scmp.eq.s32.totalorder %s23, 0
      %p109 = por %p107, %p108
      %s111 = sadd.s32 %s110, 1
      %p114 = scmp.eq.s32.totalorder %s17, 17
      %p115 = scmp.ne.s32.totalorder %s110, %s112
      %p116 = scmp.eq.s32.totalorder %s17, 0
      %p117 = por %p115, %p116
      %p118 = scmp.ne.s32.totalorder %s110, %s112
      %p119 = scmp.eq.s32.totalorder %s22, 17
      %p120 = por %p118, %p119
      %p121 = scmp.ne.s32.totalorder %s112, %s113
      %p122 = scmp.eq.s32.totalorder %s22, 0
      %p123 = por %p121, %p122
      %p124 = scmp.ne.s32.totalorder %s112, %s113
      %p125 = scmp.eq.s32.totalorder %s23, 17
      %p126 = por %p124, %p125
      %p128 = scmp.ne.s32.totalorder %s113, %s127
      %p129 = scmp.eq.s32.totalorder %s23, 0
      %p130 = por %p128, %p129
      %s132 = sadd.s32 %s131, 1
      %p135 = scmp.eq.s32.totalorder %s17, 17
      %p136 = scmp.ne.s32.totalorder %s131, %s133
      %p137 = scmp.eq.s32.totalorder %s17, 0
      %p138 = por %p136, %p137
      %p139 = scmp.ne.s32.totalorder %s131, %s133
      %p140 = scmp.eq.s32.totalorder %s22, 17
      %p141 = por %p139, %p140
      %p142 = scmp.ne.s32.totalorder %s133, %s134
      %p143 = scmp.eq.s32.totalorder %s22, 0
      %p144 = por %p142, %p143
      %p145 = scmp.ne.s32.totalorder %s133, %s134
      %p146 = scmp.eq.s32.totalorder %s23, 17
      %p147 = por %p145, %p146
      %p149 = scmp.ne.s32.totalorder %s134, %s148
      %p150 = scmp.eq.s32.totalorder %s23, 0
      %p151 = por %p149, %p150
      %s153 = sadd.s32 %s152, 1
      %p156 = scmp.eq.s32.totalorder %s17, 17
      %p157 = scmp.ne.s32.totalorder %s152, %s154
      %p158 = scmp.eq.s32.totalorder %s17, 0
      %p159 = por %p157, %p158
      %p160 = scmp.ne.s32.totalorder %s152, %s154
      %p161 = scmp.eq.s32.totalorder %s22, 17
      %p162 = por %p160, %p161
      %p163 = scmp.ne.s32.totalorder %s154, %s155
      %p164 = scmp.eq.s32.totalorder %s22, 0
      %p165 = por %p163, %p164
      %p166 = scmp.ne.s32.totalorder %s154, %s155
      %p167 = scmp.eq.s32.totalorder %s23, 17
      %p168 = por %p166, %p167
      %p170 = scmp.ne.s32.totalorder %s155, %s169
      %p171 = scmp.eq.s32.totalorder %s23, 0
      %p172 = por %p170, %p171
      %s174 = sadd.s32 %s173, 1
      %p177 = scmp.eq.s32.totalorder %s17, 17
      %p178 = scmp.ne.s32.totalorder %s173, %s175
      %p179 = scmp.eq.s32.totalorder %s17, 0
      %p180 = por %p178, %p179
      %p181 = scmp.ne.s32.totalorder %s173, %s175
      %p182 = scmp.eq.s32.totalorder %s22, 17
      %p183 = por %p181, %p182
      %p184 = scmp.ne.s32.totalorder %s175, %s176
      %p185 = scmp.eq.s32.totalorder %s22, 0
      %p186 = por %p184, %p185
      %p187 = scmp.ne.s32.totalorder %s175, %s176
      %p188 = scmp.eq.s32.totalorder %s23, 17
      %p189 = por %p187, %p188
      %p191 = scmp.ne.s32.totalorder %s176, %s190
      %p192 = scmp.eq.s32.totalorder %s23, 0
      %p193 = por %p191, %p192
      %s195 = sadd.s32 %s194, 1
      %p198 = scmp.eq.s32.totalorder %s17, 17
      %p199 = scmp.ne.s32.totalorder %s194, %s196
      %p200 = scmp.eq.s32.totalorder %s17, 0
      %p201 = por %p199, %p200
      %p202 = scmp.ne.s32.totalorder %s194, %s196
      %p203 = scmp.eq.s32.totalorder %s22, 17
      %p204 = por %p202, %p203
      %p205 = scmp.ne.s32.totalorder %s196, %s197
      %p206 = scmp.eq.s32.totalorder %s22, 0
      %p207 = por %p205, %p206
      %p208 = scmp.ne.s32.totalorder %s196, %s197
      %p209 = scmp.eq.s32.totalorder %s23, 17
      %p210 = por %p208, %p209
      %p212 = scmp.ne.s32.totalorder %s197, %s211
      %p213 = scmp.eq.s32.totalorder %s23, 0
      %p214 = por %p212, %p213
      %s215 = ssub.s32 %s24, %s36
      %s216 = ssub.s32 %s25, %s32
      %s217 = sor.u32 %s215, %s216
      %p218 = scmp.eq.s32.totalorder %s217, 0
      %s220 = sadd.s32 %s219, 1
      %s221 = scalar_select %p218, %s219, %s220
      %p224 = pneg %p218
      %p225 = scmp.eq.s32.totalorder %s17, 17
      %p226 = por %p224, %p225
      %p227 = scmp.ne.s32.totalorder %s219, %s222
      %p228 = scmp.eq.s32.totalorder %s17, 0
      %p229 = por %p227, %p228
      %p230 = scmp.ne.s32.totalorder %s219, %s222
      %p231 = scmp.eq.s32.totalorder %s22, 17
      %p232 = por %p230, %p231
      %p233 = scmp.ne.s32.totalorder %s222, %s223
      %p234 = scmp.eq.s32.totalorder %s22, 0
      %p235 = por %p233, %p234
      %p236 = scmp.ne.s32.totalorder %s222, %s223
      %p237 = scmp.eq.s32.totalorder %s23, 17
      %p238 = por %p236, %p237
      %p240 = scmp.ne.s32.totalorder %s223, %s239
      %p241 = scmp.eq.s32.totalorder %s23, 0
      %p242 = por %p240, %p241
      %p243 = scmp.le.s32.totalorder 1, %s17
      %p244 = scmp.lt.s32.totalorder %s17, 19
      %p245 = pnand %p243, %p244
      %p246 = pneg %p245
      // Predicated region
      $region9: #{foldingnet_shapes_forward.3} parent=5 // pred_check
        _
      $region10: #{foldingnet_shapes_forward.3} parent=5 // pred_check_branch
        %248 = sbr.rel (%p245) target = $region12
      $region11: #{foldingnet_shapes_forward.3} parent=5 // pred_region
        %s249 = ssub.s32 %s17, 1
        // Predicated region
        $region13: #{foldingnet_shapes_forward.3} parent=11 // pred_check
          %p250 = pneg %p102
        $region14: #{foldingnet_shapes_forward.3} parent=11 // pred_check_branch
          %252 = sbr.rel (%p250) target = $region16
        $region15: #{foldingnet_shapes_forward.3} parent=11 // pred_region
          %s254 = ssub.s32 256, 256
          %255 = vsyncadd [#allocation3], %s254
          %s256 = sshll.u32 [#allocation2], 4
          %s257 = int_to_ptr.vmem [resolvable:$true] %s256
          %262 = dma.hbm_to_vmem [thread:$0]  %s2, 256, %s257, [#allocation3], 128, 128, 8
        $region16: #{foldingnet_shapes_forward.3} parent=11 // pred_fallthru
          _
        // Predicated region
        $region17: #{foldingnet_shapes_forward.3} parent=11 // pred_check
          %p263 = pneg %p123
        $region18: #{foldingnet_shapes_forward.3} parent=11 // pred_check_branch
          %265 = sbr.rel (%p263) target = $region20
        $region19: #{foldingnet_shapes_forward.3} parent=11 // pred_region
          _
        $region20: #{foldingnet_shapes_forward.3} parent=11 // pred_fallthru
          _
        // Predicated region
        $region21: #{foldingnet_shapes_forward.3} parent=11 // pred_check
          %p266 = pneg %p144
        $region22: #{foldingnet_shapes_forward.3} parent=11 // pred_check_branch
          %268 = sbr.rel (%p266) target = $region24
        $region23: #{foldingnet_shapes_forward.3} parent=11 // pred_region
          %s270 = ssub.s32 128, 128
          %271 = vsyncadd [#allocation5], %s270
          %s273 = sshll.u32 [#allocation4], 4
          %s274 = int_to_ptr.vmem [resolvable:$true] %s273
          %276 = dma.hbm_to_vmem [thread:$0]  %s4, 128, %s274, [#allocation5]
        $region24: #{foldingnet_shapes_forward.3} parent=11 // pred_fallthru
          _
        // Predicated region
        $region25: #{foldingnet_shapes_forward.3} parent=11 // pred_check
          %p277 = pneg %p165
        $region26: #{foldingnet_shapes_forward.3} parent=11 // pred_check_branch
          %279 = sbr.rel (%p277) target = $region28
        $region27: #{foldingnet_shapes_forward.3} parent=11 // pred_region
          %s281 = ssub.s32 256, 256
          %282 = vsyncadd [#allocation5], %s281
          %s283 = sshll.u32 [#allocation6], 4
          %s284 = int_to_ptr.vmem [resolvable:$true] %s283
          %289 = dma.hbm_to_vmem [thread:$0]  %s5, 256, %s284, [#allocation5], 128, 128, 8
        $region28: #{foldingnet_shapes_forward.3} parent=11 // pred_fallthru
          _
        // Predicated region
        $region29: #{foldingnet_shapes_forward.3} parent=11 // pred_check
          %p290 = pneg %p186
        $region30: #{foldingnet_shapes_forward.3} parent=11 // pred_check_branch
          %292 = sbr.rel (%p290) target = $region32
        $region31: #{foldingnet_shapes_forward.3} parent=11 // pred_region
          _
        $region32: #{foldingnet_shapes_forward.3} parent=11 // pred_fallthru
          _
        // Predicated region
        $region33: #{foldingnet_shapes_forward.3} parent=11 // pred_check
          %p293 = pneg %p207
        $region34: #{foldingnet_shapes_forward.3} parent=11 // pred_check_branch
          %295 = sbr.rel (%p293) target = $region36
        $region35: #{foldingnet_shapes_forward.3} parent=11 // pred_region
          %s297 = ssub.s32 64, 64
          %298 = vsyncadd [#allocation8], %s297
          %s300 = sshll.u32 [#allocation7], 4
          %s301 = int_to_ptr.vmem [resolvable:$true] %s300
          %303 = dma.hbm_to_vmem [thread:$0]  %s7, 64, %s301, [#allocation8]
        $region36: #{foldingnet_shapes_forward.3} parent=11 // pred_fallthru
          _
      $region12: #{foldingnet_shapes_forward.3} parent=5 // pred_fallthru
        _
      %p304 = scmp.lt.s32.totalorder %s17, 18
      // Predicated region
      $region37: #{foldingnet_shapes_forward.3} parent=5 // pred_check
        %p305 = pneg %p304
      $region38: #{foldingnet_shapes_forward.3} parent=5 // pred_check_branch
        %307 = sbr.rel (%p305) target = $region40
      $region39: #{foldingnet_shapes_forward.3} parent=5 // pred_region
        // Predicated region
        $region41: #{foldingnet_shapes_forward.3} parent=39 // pred_check
          %p308 = pneg %p49
        $region42: #{foldingnet_shapes_forward.3} parent=39 // pred_check_branch
          %310 = sbr.rel (%p308) target = $region44
        $region43: #{foldingnet_shapes_forward.3} parent=39 // pred_region
          %s311 = smul.u32 27, %s25
          %p312 = scmp.lt.s32.totalorder %s311, 242
          %s313 = scalar_select %p312, %s311, 242
          %s314 = smul.addr %s313, 8
          %s315 = scalar_lea.vmem %s0, %s314
          %s316 = smul.u32 27, %s25
        $region44: #{foldingnet_shapes_forward.3} parent=39 // pred_fallthru
          _
        // Predicated region
        $region45: #{foldingnet_shapes_forward.3} parent=39 // pred_check
          %p317 = pneg %p75
        $region46: #{foldingnet_shapes_forward.3} parent=39 // pred_check_branch
          %319 = sbr.rel (%p317) target = $region48
        $region47: #{foldingnet_shapes_forward.3} parent=39 // pred_region
          %p320 = scmp.lt.s32.totalorder %s24, 1
          %s321 = scalar_select %p320, %s24, 1
          %s322 = scalar_lea.vmem %s1, %s321
        $region48: #{foldingnet_shapes_forward.3} parent=39 // pred_fallthru
          _
      $region40: #{foldingnet_shapes_forward.3} parent=5 // pred_fallthru
        _
      %p323 = scmp.le.s32.totalorder 1, %s17
      %p324 = scmp.lt.s32.totalorder %s17, 19
      %p325 = pnand %p323, %p324
      %p326 = pneg %p325
      // Predicated region
      $region49: #{foldingnet_shapes_forward.3} parent=5 // pred_check
        _
      $region50: #{foldingnet_shapes_forward.3} parent=5 // pred_check_branch
        %328 = sbr.rel (%p325) target = $region52
      $region51: #{foldingnet_shapes_forward.3} parent=5 // pred_region
        %s329 = ssub.s32 %s17, 1
        // Predicated region
        $region53: #{foldingnet_shapes_forward.3} parent=51 // pred_check
          %p330 = pneg %p102
        $region54: #{foldingnet_shapes_forward.3} parent=51 // pred_check_branch
          %332 = sbr.rel (%p330) target = $region56
        $region55: #{foldingnet_shapes_forward.3} parent=51 // pred_region
          %333 = dma.done [#allocation3], 256
        $region56: #{foldingnet_shapes_forward.3} parent=51 // pred_fallthru
          _
        // Predicated region
        $region57: #{foldingnet_shapes_forward.3} parent=51 // pred_check
          %p334 = pneg %p144
        $region58: #{foldingnet_shapes_forward.3} parent=51 // pred_check_branch
          %336 = sbr.rel (%p334) target = $region60
        $region59: #{foldingnet_shapes_forward.3} parent=51 // pred_region
          %337 = dma.done [#allocation5], 128
        $region60: #{foldingnet_shapes_forward.3} parent=51 // pred_fallthru
          _
        // Predicated region
        $region61: #{foldingnet_shapes_forward.3} parent=51 // pred_check
          %p338 = pneg %p165
        $region62: #{foldingnet_shapes_forward.3} parent=51 // pred_check_branch
          %340 = sbr.rel (%p338) target = $region64
        $region63: #{foldingnet_shapes_forward.3} parent=51 // pred_region
          %341 = dma.done [#allocation5], 256
        $region64: #{foldingnet_shapes_forward.3} parent=51 // pred_fallthru
          _
        // Predicated region
        $region65: #{foldingnet_shapes_forward.3} parent=51 // pred_check
          %p342 = pneg %p207
        $region66: #{foldingnet_shapes_forward.3} parent=51 // pred_check_branch
          %344 = sbr.rel (%p342) target = $region68
        $region67: #{foldingnet_shapes_forward.3} parent=51 // pred_region
          %345 = dma.done [#allocation8], 64
        $region68: #{foldingnet_shapes_forward.3} parent=51 // pred_fallthru
          _
        %s346 = smul.u32 27, %s27
        %p347 = scmp.lt.s32.totalorder %s346, 242
        %s348 = scalar_select %p347, %s346, 242
        %s349 = smul.addr %s348, 8
        %s350 = scalar_lea.vmem %s0, %s349
        %p351 = pneg %p55
        %p352 = pneg %p52
        %p353 = scmp.lt.s32.totalorder %s26, 1
        %s354 = scalar_select %p353, %s26, 1
        %s355 = scalar_lea.vmem %s1, %s354
        %p356 = pneg %p81
        %p357 = pneg %p78
        %p358 = pneg %p102
        %p359 = pneg %p99
        %p360 = pneg %p123
        %p361 = pneg %p120
        %p362 = pneg %p144
        %p363 = pneg %p141
        %p364 = pneg %p165
        %p365 = pneg %p162
        %p366 = pneg %p186
        %p367 = pneg %p183
        %p368 = pneg %p207
        %p369 = pneg %p204
        %p370 = pneg %p235
        %p371 = pneg %p232
        %s372 = smul.u32 27, %s27
        %p373 = scmp.lt.s32.totalorder %s26, 1
        %s374 = scalar_select %p373, %s26, 1
        %p375 = scmp.lt.s32.totalorder %s372, 242
        %s376 = scalar_select %p375, %s372, 242
        %s377 = smul.addr %s374, 243
        %s378 = sadd.s32 %s376, %s377
        %s379 = smul.addr %s378, 8
        %s380 = scalar_lea.vmem %s8, %s379
        %s381 = smul.u32 27, %s27
        %p382 = scmp.lt.s32.totalorder %s381, 242
        %s383 = scalar_select %p382, %s381, 242
        %s384 = smul.addr %s383, 8
        %s385 = scalar_lea.vmem %s0, %s384
        %s386 = smul.u32 27, %s27
        %p387 = scmp.lt.s32.totalorder %s26, 1
        %s388 = scalar_select %p387, %s26, 1
        %s389 = scalar_lea.vmem %s1, %s388
        %s390 = smul.u32 27, %s27
        %p391 = scmp.lt.s32.totalorder %s26, 1
        %s392 = scalar_select %p391, %s26, 1
        %p393 = scmp.lt.s32.totalorder %s390, 242
        %s394 = scalar_select %p393, %s390, 242
        %s395 = smul.addr %s392, 243
        %s396 = sadd.s32 %s394, %s395
        %s397 = smul.addr %s396, 8
        %s398 = scalar_lea.vmem %s8, %s397
        %s399 = smul.u32 27, %s27
        %v400 = vld [vmem:[%s389] sm:$0x1]
        %v401 = vld [vmem:[%s385] sm:$0xff]
        %v402 = vld [vmem:[%s385 + $0x8] sm:$0xff]
        %v403 = vld [vmem:[%s385 + $0x10] sm:$0xff]
        %v404 = vld [vmem:[%s385 + $0x18] sm:$0xff]
        %v405 = vld [vmem:[%s385 + $0x20] sm:$0xff]
        %v406 = vld [vmem:[%s385 + $0x28] sm:$0xff]
        %v407 = vld [vmem:[%s385 + $0x30] sm:$0xff]
        %v408 = vld [vmem:[%s385 + $0x38] sm:$0xff]
        %v409 = vld [vmem:[%s385 + $0x40] sm:$0xff]
        %v410 = vld [vmem:[%s385 + $0x48] sm:$0xff]
        %v411 = vld [vmem:[%s385 + $0x50] sm:$0xff]
        %v412 = vld [vmem:[%s385 + $0x58] sm:$0xff]
        %v413 = vld [vmem:[%s385 + $0x60] sm:$0xff]
        %v414 = vld [vmem:[%s385 + $0x68] sm:$0xff]
        %v415 = vld [vmem:[%s385 + $0x70] sm:$0xff]
        %v416 = vld [vmem:[%s385 + $0x78] sm:$0xff]
        %v417 = vld [vmem:[%s385 + $0x80] sm:$0xff]
        %v418 = vld [vmem:[%s385 + $0x88] sm:$0xff]
        %v419 = vld [vmem:[%s385 + $0x90] sm:$0xff]
        %v420 = vld [vmem:[%s385 + $0x98] sm:$0xff]
        %v421 = vld [vmem:[%s385 + $0xa0] sm:$0xff]
        %v422 = vld [vmem:[%s385 + $0xa8] sm:$0xff]
        %v423 = vld [vmem:[%s385 + $0xb0] sm:$0xff]
        %v424 = vld [vmem:[%s385 + $0xb8] sm:$0xff]
        %v425 = vld [vmem:[%s385 + $0xc0] sm:$0xff]
        %v426 = vld [vmem:[%s385 + $0xc8] sm:$0xff]
        %v427 = vld [vmem:[%s385 + $0xd0] sm:$0xff]
        %v428 = vld [vmem:[#allocation2] sm:$0xff]
        %v429 = vld [vmem:[#allocation2 + $0x8] sm:$0xff]
        %vm430 = vcmask 130048
        %v432 = vsel %vm430, %v400, 0
        %434 = vmatprep.subr.mxu0 0.0
        %435 = vmatpush1.msra.mxu0 %v428
        %436 = vmatprep.subr.mxu0 0.0
        %437 = vmatpush1.msra.mxu0 %v429
        %438 = vmatprep.subr.mxu0 0.0
        %439 = vmatpush1.msra.mxu0 0.0
        %440 = vmatprep.subr.mxu0 0.0
        %441 = vmatpush1.msra.mxu0 0.0
        %442 = vmatprep.subr.mxu0 0.0
        %443 = vmatpush1.msra.mxu0 0.0
        %444 = vmatprep.subr.mxu0 0.0
        %445 = vmatpush1.msra.mxu0 0.0
        %446 = vmatprep.subr.mxu0 0.0
        %447 = vmatpush1.msra.mxu0 0.0
        %448 = vmatprep.subr.mxu0 0.0
        %449 = vmatpush1.msra.mxu0 0.0
        %450 = vmatprep.subr.mxu0 0.0
        %451 = vmatpush1.msra.mxu0 0.0
        %452 = vmatprep.subr.mxu0 0.0
        %453 = vmatpush1.msra.mxu0 0.0
        %454 = vmatprep.subr.mxu0 0.0
        %455 = vmatpush1.msra.mxu0 0.0
        %456 = vmatprep.subr.mxu0 0.0
        %457 = vmatpush1.msra.mxu0 0.0
        %458 = vmatprep.subr.mxu0 0.0
        %459 = vmatpush1.msra.mxu0 0.0
        %460 = vmatprep.subr.mxu0 0.0
        %461 = vmatpush1.msra.mxu0 0.0
        %462 = vmatprep.subr.mxu0 0.0
        %463 = vmatpush1.msra.mxu0 0.0
        %464 = vmatprep.subr.mxu0 0.0
        %465 = vmatpush1.msra.mxu0 0.0
        %466 = vmatprep.subr.mxu0 0.0
        %467 = vmatpush1.msra.mxu0 0.0
        %468 = vmatprep.subr.mxu0 0.0
        %469 = vmatpush1.msra.mxu0 0.0
        %470 = vmatprep.subr.mxu0 0.0
        %471 = vmatpush1.msra.mxu0 0.0
        %472 = vmatprep.subr.mxu0 0.0
        %473 = vmatpush1.msra.mxu0 0.0
        %474 = vmatprep.subr.mxu0 0.0
        %475 = vmatpush1.msra.mxu0 0.0
        %476 = vmatprep.subr.mxu0 0.0
        %477 = vmatpush1.msra.mxu0 0.0
        %478 = vmatprep.subr.mxu0 0.0
        %479 = vmatpush1.msra.mxu0 0.0
        %480 = vmatprep.subr.mxu0 0.0
        %481 = vmatpush1.msra.mxu0 0.0
        %482 = vmatprep.subr.mxu0 0.0
        %483 = vmatpush1.msra.mxu0 0.0
        %484 = vmatprep.subr.mxu0 0.0
        %485 = vmatpush1.msra.mxu0 0.0
        %486 = vmatprep.subr.mxu0 0.0
        %487 = vmatpush1.msra.mxu0 0.0
        %488 = vmatprep.subr.mxu0 0.0
        %489 = vmatpush1.msra.mxu0 0.0
        %490 = vmatprep.subr.mxu0 0.0
        %491 = vmatpush1.msra.mxu0 0.0
        %492 = vmatprep.subr.mxu0 0.0
        %493 = vmatpush1.msra.mxu0 0.0
        %494 = vmatprep.subr.mxu0 0.0
        %495 = vmatpush1.msra.mxu0 0.0
        %496 = vmatprep.subr.mxu0 0.0
        %497 = vmatpush1.msra.mxu0 0.0
        %498 = vmatprep.mubr.f32.mxu0 0.0
        %499 = vmatmul.mubr.f32.gmra.mrb[0].mxu0 %v432
        %v500 = vpop.f32.mrb[0].mxu0
        %v501 = vadd.f32 0.0, %v500
        %v502 = vpop.f32.mrb[0].mxu0
        %503 = vdwg.mxu0
        %v504 = vlaneseq
        %v505 = vshrl.u32 %v504, 7
        %v506 = vsub.s32 0, %v505
        %v507 = vrot.slane %v501, %v506
        %v508 = vadd.f32 %v401, %v507
        %v509 = vadd.f32 %v402, %v507
        %v510 = vadd.f32 %v403, %v507
        %v511 = vadd.f32 %v404, %v507
        %v512 = vadd.f32 %v405, %v507
        %v513 = vadd.f32 %v406, %v507
        %v514 = vadd.f32 %v407, %v507
        %v515 = vadd.f32 %v408, %v507
        %v516 = vadd.f32 %v409, %v507
        %v517 = vadd.f32 %v410, %v507
        %v518 = vadd.f32 %v411, %v507
        %v519 = vadd.f32 %v412, %v507
        %v520 = vadd.f32 %v413, %v507
        %v521 = vadd.f32 %v414, %v507
        %v522 = vadd.f32 %v415, %v507
        %v523 = vadd.f32 %v416, %v507
        %v524 = vadd.f32 %v417, %v507
        %v525 = vadd.f32 %v418, %v507
        %v526 = vadd.f32 %v419, %v507
        %v527 = vadd.f32 %v420, %v507
        %v528 = vadd.f32 %v421, %v507
        %v529 = vadd.f32 %v422, %v507
        %v530 = vadd.f32 %v423, %v507
        %v531 = vadd.f32 %v424, %v507
        %v532 = vadd.f32 %v425, %v507
        %v533 = vadd.f32 %v426, %v507
        %v534 = vadd.f32 %v427, %v507
        %v535 = vmax.f32 %v508, 0.0
        %v536 = vmax.f32 %v509, 0.0
        %v537 = vmax.f32 %v510, 0.0
        %v538 = vmax.f32 %v511, 0.0
        %v539 = vmax.f32 %v512, 0.0
        %v540 = vmax.f32 %v513, 0.0
        %v541 = vmax.f32 %v514, 0.0
        %v542 = vmax.f32 %v515, 0.0
        %v543 = vmax.f32 %v516, 0.0
        %v544 = vmax.f32 %v517, 0.0
        %v545 = vmax.f32 %v518, 0.0
        %v546 = vmax.f32 %v519, 0.0
        %v547 = vmax.f32 %v520, 0.0
        %v548 = vmax.f32 %v521, 0.0
        %v549 = vmax.f32 %v522, 0.0
        %v550 = vmax.f32 %v523, 0.0
        %v551 = vmax.f32 %v524, 0.0
        %v552 = vmax.f32 %v525, 0.0
        %v553 = vmax.f32 %v526, 0.0
        %v554 = vmax.f32 %v527, 0.0
        %v555 = vmax.f32 %v528, 0.0
        %v556 = vmax.f32 %v529, 0.0
        %v557 = vmax.f32 %v530, 0.0
        %v558 = vmax.f32 %v531, 0.0
        %v559 = vmax.f32 %v532, 0.0
        %v560 = vmax.f32 %v533, 0.0
        %v561 = vmax.f32 %v534, 0.0
        %v562 = vld [vmem:[%s3] sm:$0xff]
        %v563 = vld [vmem:[%s3 + $0x8] sm:$0xff]
        %v564 = vld [vmem:[%s3 + $0x10] sm:$0xff]
        %v565 = vld [vmem:[%s3 + $0x18] sm:$0xff]
        %v566 = vld [vmem:[#allocation7] sm:$0x1]
        %v567 = vlaneseq
        %v568 = vshrl.u32 %v567, 7
        %v569 = vsub.s32 0, %v568
        %v570 = vrot.slane %v566, %v569
        %vm571 = vcmask 261120
        %v573 = vsel %vm571, %v535, 0
        %v576 = vsel %vm571, %v536, 0
        %v579 = vsel %vm571, %v537, 0
        %v582 = vsel %vm571, %v538, 0
        %v585 = vsel %vm571, %v539, 0
        %v588 = vsel %vm571, %v540, 0
        %v591 = vsel %vm571, %v541, 0
        %v594 = vsel %vm571, %v542, 0
        %v597 = vsel %vm571, %v543, 0
        %v600 = vsel %vm571, %v544, 0
        %v603 = vsel %vm571, %v545, 0
        %v606 = vsel %vm571, %v546, 0
        %v609 = vsel %vm571, %v547, 0
        %v612 = vsel %vm571, %v548, 0
        %v615 = vsel %vm571, %v549, 0
        %v618 = vsel %vm571, %v550, 0
        %v621 = vsel %vm571, %v551, 0
        %v624 = vsel %vm571, %v552, 0
        %v627 = vsel %vm571, %v553, 0
        %v630 = vsel %vm571, %v554, 0
        %v633 = vsel %vm571, %v555, 0
        %v636 = vsel %vm571, %v556, 0
        %v639 = vsel %vm571, %v557, 0
        %v642 = vsel %vm571, %v558, 0
        %v645 = vsel %vm571, %v559, 0
        %v648 = vsel %vm571, %v560, 0
        %v651 = vsel %vm571, %v561, 0
        %653 = vmatprep.subr.mxu0 0.0
        %654 = vmatpush1.msra.mxu0 %v562
        %655 = vmatprep.subr.mxu0 0.0
        %656 = vmatpush1.msra.mxu0 %v563
        %657 = vmatprep.subr.mxu0 0.0
        %658 = vmatpush1.msra.mxu0 %v564
        %659 = vmatprep.subr.mxu0 0.0
        %660 = vmatpush1.msra.mxu0 %v565
        %661 = vmatprep.subr.mxu0 0.0
        %662 = vmatpush1.msra.mxu0 0.0
        %663 = vmatprep.subr.mxu0 0.0
        %664 = vmatpush1.msra.mxu0 0.0
        %665 = vmatprep.subr.mxu0 0.0
        %666 = vmatpush1.msra.mxu0 0.0
        %667 = vmatprep.subr.mxu0 0.0
        %668 = vmatpush1.msra.mxu0 0.0
        %669 = vmatprep.subr.mxu0 0.0
        %670 = vmatpush1.msra.mxu0 0.0
        %671 = vmatprep.subr.mxu0 0.0
        %672 = vmatpush1.msra.mxu0 0.0
        %673 = vmatprep.subr.mxu0 0.0
        %674 = vmatpush1.msra.mxu0 0.0
        %675 = vmatprep.subr.mxu0 0.0
        %676 = vmatpush1.msra.mxu0 0.0
        %677 = vmatprep.subr.mxu0 0.0
        %678 = vmatpush1.msra.mxu0 0.0
        %679 = vmatprep.subr.mxu0 0.0
        %680 = vmatpush1.msra.mxu0 0.0
        %681 = vmatprep.subr.mxu0 0.0
        %682 = vmatpush1.msra.mxu0 0.0
        %683 = vmatprep.subr.mxu0 0.0
        %684 = vmatpush1.msra.mxu0 0.0
        %685 = vmatprep.subr.mxu0 0.0
        %686 = vmatpush1.msra.mxu0 0.0
        %687 = vmatprep.subr.mxu0 0.0
        %688 = vmatpush1.msra.mxu0 0.0
        %689 = vmatprep.subr.mxu0 0.0
        %690 = vmatpush1.msra.mxu0 0.0
        %691 = vmatprep.subr.mxu0 0.0
        %692 = vmatpush1.msra.mxu0 0.0
        %693 = vmatprep.subr.mxu0 0.0
        %694 = vmatpush1.msra.mxu0 0.0
        %695 = vmatprep.subr.mxu0 0.0
        %696 = vmatpush1.msra.mxu0 0.0
        %697 = vmatprep.subr.mxu0 0.0
        %698 = vmatpush1.msra.mxu0 0.0
        %699 = vmatprep.subr.mxu0 0.0
        %700 = vmatpush1.msra.mxu0 0.0
        %701 = vmatprep.subr.mxu0 0.0
        %702 = vmatpush1.msra.mxu0 0.0
        %703 = vmatprep.subr.mxu0 0.0
        %704 = vmatpush1.msra.mxu0 0.0
        %705 = vmatprep.subr.mxu0 0.0
        %706 = vmatpush1.msra.mxu0 0.0
        %707 = vmatprep.subr.mxu0 0.0
        %708 = vmatpush1.msra.mxu0 0.0
        %709 = vmatprep.subr.mxu0 0.0
        %710 = vmatpush1.msra.mxu0 0.0
        %711 = vmatprep.subr.mxu0 0.0
        %712 = vmatpush1.msra.mxu0 0.0
        %713 = vmatprep.subr.mxu0 0.0
        %714 = vmatpush1.msra.mxu0 0.0
        %715 = vmatprep.subr.mxu0 0.0
        %716 = vmatpush1.msra.mxu0 0.0
        %717 = vmatprep.mubr.f32.mxu0 0.0
        %718 = vmatmul.mubr.f32.gmra.mrb[0].mxu0 %v573
        %v719 = vpop.f32.mrb[0].mxu0
        %v720 = vadd.f32 %v570, %v719
        %v721 = vpop.f32.mrb[0].mxu0
        %722 = vmatprep.mubr.f32.mxu0 0.0
        %723 = vmatmul.mubr.f32.gmra.mrb[0].mxu0 %v576
        %v724 = vpop.f32.mrb[0].mxu0
        %v725 = vadd.f32 %v570, %v724
        %v726 = vpop.f32.mrb[0].mxu0
        %727 = vmatprep.mubr.f32.mxu0 0.0
        %728 = vmatmul.mubr.f32.gmra.mrb[0].mxu0 %v579
        %v729 = vpop.f32.mrb[0].mxu0
        %v730 = vadd.f32 %v570, %v729
        %v731 = vpop.f32.mrb[0].mxu0
        %732 = vmatprep.mubr.f32.mxu0 0.0
        %733 = vmatmul.mubr.f32.gmra.mrb[0].mxu0 %v582
        %v734 = vpop.f32.mrb[0].mxu0
        %v735 = vadd.f32 %v570, %v734
        %v736 = vpop.f32.mrb[0].mxu0
        %737 = vmatprep.mubr.f32.mxu0 0.0
        %738 = vmatmul.mubr.f32.gmra.mrb[0].mxu0 %v585
        %v739 = vpop.f32.mrb[0].mxu0
        %v740 = vadd.f32 %v570, %v739
        %v741 = vpop.f32.mrb[0].mxu0
        %742 = vmatprep.mubr.f32.mxu0 0.0
        %743 = vmatmul.mubr.f32.gmra.mrb[0].mxu0 %v588
        %v744 = vpop.f32.mrb[0].mxu0
        %v745 = vadd.f32 %v570, %v744
        %v746 = vpop.f32.mrb[0].mxu0
        %747 = vmatprep.mubr.f32.mxu0 0.0
        %748 = vmatmul.mubr.f32.gmra.mrb[0].mxu0 %v591
        %v749 = vpop.f32.mrb[0].mxu0
        %v750 = vadd.f32 %v570, %v749
        %v751 = vpop.f32.mrb[0].mxu0
        %752 = vmatprep.mubr.f32.mxu0 0.0
        %753 = vmatmul.mubr.f32.gmra.mrb[0].mxu0 %v594
        %v754 = vpop.f32.mrb[0].mxu0
        %v755 = vadd.f32 %v570, %v754
        %v756 = vpop.f32.mrb[0].mxu0
        %757 = vmatprep.mubr.f32.mxu0 0.0
        %758 = vmatmul.mubr.f32.gmra.mrb[0].mxu0 %v597
        %v759 = vpop.f32.mrb[0].mxu0
        %v760 = vadd.f32 %v570, %v759
        %v761 = vpop.f32.mrb[0].mxu0
        %762 = vmatprep.mubr.f32.mxu0 0.0
        %763 = vmatmul.mubr.f32.gmra.mrb[0].mxu0 %v600
        %v764 = vpop.f32.mrb[0].mxu0
        %v765 = vadd.f32 %v570, %v764
        %v766 = vpop.f32.mrb[0].mxu0
        %767 = vmatprep.mubr.f32.mxu0 0.0
        %768 = vmatmul.mubr.f32.gmra.mrb[0].mxu0 %v603
        %v769 = vpop.f32.mrb[0].mxu0
        %v770 = vadd.f32 %v570, %v769
        %v771 = vpop.f32.mrb[0].mxu0
        %772 = vmatprep.mubr.f32.mxu0 0.0
        %773 = vmatmul.mubr.f32.gmra.mrb[0].mxu0 %v606
        %v774 = vpop.f32.mrb[0].mxu0
        %v775 = vadd.f32 %v570, %v774
        %v776 = vpop.f32.mrb[0].mxu0
        %777 = vmatprep.mubr.f32.mxu0 0.0
        %778 = vmatmul.mubr.f32.gmra.mrb[0].mxu0 %v609
        %v779 = vpop.f32.mrb[0].mxu0
        %v780 = vadd.f32 %v570, %v779
        %v781 = vpop.f32.mrb[0].mxu0
        %782 = vmatprep.mubr.f32.mxu0 0.0
        %783 = vmatmul.mubr.f32.gmra.mrb[0].mxu0 %v612
        %v784 = vpop.f32.mrb[0].mxu0
        %v785 = vadd.f32 %v570, %v784
        %v786 = vpop.f32.mrb[0].mxu0
        %787 = vmatprep.mubr.f32.mxu0 0.0
        %788 = vmatmul.mubr.f32.gmra.mrb[0].mxu0 %v615
        %v789 = vpop.f32.mrb[0].mxu0
        %v790 = vadd.f32 %v570, %v789
        %v791 = vpop.f32.mrb[0].mxu0
        %792 = vmatprep.mubr.f32.mxu0 0.0
        %793 = vmatmul.mubr.f32.gmra.mrb[0].mxu0 %v618
        %v794 = vpop.f32.mrb[0].mxu0
        %v795 = vadd.f32 %v570, %v794
        %v796 = vpop.f32.mrb[0].mxu0
        %797 = vmatprep.mubr.f32.mxu0 0.0
        %798 = vmatmul.mubr.f32.gmra.mrb[0].mxu0 %v621
        %v799 = vpop.f32.mrb[0].mxu0
        %v800 = vadd.f32 %v570, %v799
        %v801 = vpop.f32.mrb[0].mxu0
        %802 = vmatprep.mubr.f32.mxu0 0.0
        %803 = vmatmul.mubr.f32.gmra.mrb[0].mxu0 %v624
        %v804 = vpop.f32.mrb[0].mxu0
        %v805 = vadd.f32 %v570, %v804
        %v806 = vpop.f32.mrb[0].mxu0
        %807 = vmatprep.mubr.f32.mxu0 0.0
        %808 = vmatmul.mubr.f32.gmra.mrb[0].mxu0 %v627
        %v809 = vpop.f32.mrb[0].mxu0
        %v810 = vadd.f32 %v570, %v809
        %v811 = vpop.f32.mrb[0].mxu0
        %812 = vmatprep.mubr.f32.mxu0 0.0
        %813 = vmatmul.mubr.f32.gmra.mrb[0].mxu0 %v630
        %v814 = vpop.f32.mrb[0].mxu0
        %v815 = vadd.f32 %v570, %v814
        %v816 = vpop.f32.mrb[0].mxu0
        %817 = vmatprep.mubr.f32.mxu0 0.0
        %818 = vmatmul.mubr.f32.gmra.mrb[0].mxu0 %v633
        %v819 = vpop.f32.mrb[0].mxu0
        %v820 = vadd.f32 %v570, %v819
        %v821 = vpop.f32.mrb[0].mxu0
        %822 = vmatprep.mubr.f32.mxu0 0.0
        %823 = vmatmul.mubr.f32.gmra.mrb[0].mxu0 %v636
        %v824 = vpop.f32.mrb[0].mxu0
        %v825 = vadd.f32 %v570, %v824
        %v826 = vpop.f32.mrb[0].mxu0
        %827 = vmatprep.mubr.f32.mxu0 0.0
        %828 = vmatmul.mubr.f32.gmra.mrb[0].mxu0 %v639
        %v829 = vpop.f32.mrb[0].mxu0
        %v830 = vadd.f32 %v570, %v829
        %v831 = vpop.f32.mrb[0].mxu0
        %832 = vmatprep.mubr.f32.mxu0 0.0
        %833 = vmatmul.mubr.f32.gmra.mrb[0].mxu0 %v642
        %v834 = vpop.f32.mrb[0].mxu0
        %v835 = vadd.f32 %v570, %v834
        %v836 = vpop.f32.mrb[0].mxu0
        %837 = vmatprep.mubr.f32.mxu0 0.0
        %838 = vmatmul.mubr.f32.gmra.mrb[0].mxu0 %v645
        %v839 = vpop.f32.mrb[0].mxu0
        %v840 = vadd.f32 %v570, %v839
        %v841 = vpop.f32.mrb[0].mxu0
        %842 = vmatprep.mubr.f32.mxu0 0.0
        %843 = vmatmul.mubr.f32.gmra.mrb[0].mxu0 %v648
        %v844 = vpop.f32.mrb[0].mxu0
        %v845 = vadd.f32 %v570, %v844
        %v846 = vpop.f32.mrb[0].mxu0
        %847 = vmatprep.mubr.f32.mxu0 0.0
        %848 = vmatmul.mubr.f32.gmra.mrb[0].mxu0 %v651
        %v849 = vpop.f32.mrb[0].mxu0
        %v850 = vadd.f32 %v570, %v849
        %v851 = vpop.f32.mrb[0].mxu0
        %852 = vdwg.mxu0
        %v853 = vld [vmem:[#allocation4] sm:$0xff]
        %v854 = vld [vmem:[#allocation6] sm:$0xff]
        %v855 = vld [vmem:[#allocation6 + $0x8] sm:$0xff]
        %856 = vmatprep.subr.mxu0 0.0
        %857 = vmatpush1.msra.mxu0 %v854
        %858 = vmatprep.subr.mxu0 0.0
        %859 = vmatpush1.msra.mxu0 %v855
        %860 = vmatprep.subr.mxu0 0.0
        %861 = vmatpush1.msra.mxu0 0.0
        %862 = vmatprep.subr.mxu0 0.0
        %863 = vmatpush1.msra.mxu0 0.0
        %864 = vmatprep.subr.mxu0 0.0
        %865 = vmatpush1.msra.mxu0 0.0
        %866 = vmatprep.subr.mxu0 0.0
        %867 = vmatpush1.msra.mxu0 0.0
        %868 = vmatprep.subr.mxu0 0.0
        %869 = vmatpush1.msra.mxu0 0.0
        %870 = vmatprep.subr.mxu0 0.0
        %871 = vmatpush1.msra.mxu0 0.0
        %872 = vmatprep.subr.mxu0 0.0
        %873 = vmatpush1.msra.mxu0 0.0
        %874 = vmatprep.subr.mxu0 0.0
        %875 = vmatpush1.msra.mxu0 0.0
        %876 = vmatprep.subr.mxu0 0.0
        %877 = vmatpush1.msra.mxu0 0.0
        %878 = vmatprep.subr.mxu0 0.0
        %879 = vmatpush1.msra.mxu0 0.0
        %880 = vmatprep.subr.mxu0 0.0
        %881 = vmatpush1.msra.mxu0 0.0
        %882 = vmatprep.subr.mxu0 0.0
        %883 = vmatpush1.msra.mxu0 0.0
        %884 = vmatprep.subr.mxu0 0.0
        %885 = vmatpush1.msra.mxu0 0.0
        %886 = vmatprep.subr.mxu0 0.0
        %887 = vmatpush1.msra.mxu0 0.0
        %888 = vmatprep.subr.mxu0 0.0
        %889 = vmatpush1.msra.mxu0 0.0
        %890 = vmatprep.subr.mxu0 0.0
        %891 = vmatpush1.msra.mxu0 0.0
        %892 = vmatprep.subr.mxu0 0.0
        %893 = vmatpush1.msra.mxu0 0.0
        %894 = vmatprep.subr.mxu0 0.0
        %895 = vmatpush1.msra.mxu0 0.0
        %896 = vmatprep.subr.mxu0 0.0
        %897 = vmatpush1.msra.mxu0 0.0
        %898 = vmatprep.subr.mxu0 0.0
        %899 = vmatpush1.msra.mxu0 0.0
        %900 = vmatprep.subr.mxu0 0.0
        %901 = vmatpush1.msra.mxu0 0.0
        %902 = vmatprep.subr.mxu0 0.0
        %903 = vmatpush1.msra.mxu0 0.0
        %904 = vmatprep.subr.mxu0 0.0
        %905 = vmatpush1.msra.mxu0 0.0
        %906 = vmatprep.subr.mxu0 0.0
        %907 = vmatpush1.msra.mxu0 0.0
        %908 = vmatprep.subr.mxu0 0.0
        %909 = vmatpush1.msra.mxu0 0.0
        %910 = vmatprep.subr.mxu0 0.0
        %911 = vmatpush1.msra.mxu0 0.0
        %912 = vmatprep.subr.mxu0 0.0
        %913 = vmatpush1.msra.mxu0 0.0
        %914 = vmatprep.subr.mxu0 0.0
        %915 = vmatpush1.msra.mxu0 0.0
        %916 = vmatprep.subr.mxu0 0.0
        %917 = vmatpush1.msra.mxu0 0.0
        %918 = vmatprep.subr.mxu0 0.0
        %919 = vmatpush1.msra.mxu0 0.0
        %920 = vmatprep.mubr.f32.mxu0 0.0
        %921 = vmatmul.mubr.f32.gmra.mrb[0].mxu0 %v432
        %v922 = vpop.f32.mrb[0].mxu0
        %v923 = vadd.f32 0.0, %v922
        %v924 = vpop.f32.mrb[0].mxu0
        %925 = vdwg.mxu0
        %v926 = vlaneseq
        %v927 = vshrl.u32 %v926, 7
        %v928 = vsub.s32 0, %v927
        %v929 = vrot.slane %v923, %v928
        %vm930 = vcmask 64512
        %v932 = vsel %vm930, %v720, 0
        %v935 = vsel %vm930, %v725, 0
        %v938 = vsel %vm930, %v730, 0
        %v941 = vsel %vm930, %v735, 0
        %v944 = vsel %vm930, %v740, 0
        %v947 = vsel %vm930, %v745, 0
        %v950 = vsel %vm930, %v750, 0
        %v953 = vsel %vm930, %v755, 0
        %v956 = vsel %vm930, %v760, 0
        %v959 = vsel %vm930, %v765, 0
        %v962 = vsel %vm930, %v770, 0
        %v965 = vsel %vm930, %v775, 0
        %v968 = vsel %vm930, %v780, 0
        %v971 = vsel %vm930, %v785, 0
        %v974 = vsel %vm930, %v790, 0
        %v977 = vsel %vm930, %v795, 0
        %v980 = vsel %vm930, %v800, 0
        %v983 = vsel %vm930, %v805, 0
        %v986 = vsel %vm930, %v810, 0
        %v989 = vsel %vm930, %v815, 0
        %v992 = vsel %vm930, %v820, 0
        %v995 = vsel %vm930, %v825, 0
        %v998 = vsel %vm930, %v830, 0
        %v1001 = vsel %vm930, %v835, 0
        %v1004 = vsel %vm930, %v840, 0
        %v1007 = vsel %vm930, %v845, 0
        %v1010 = vsel %vm930, %v850, 0
        %1012 = vmatprep.subr.mxu0 0.0
        %1013 = vmatpush1.msra.mxu0 %v853
        %1014 = vmatprep.subr.mxu0 0.0
        %1015 = vmatpush1.msra.mxu0 0.0
        %1016 = vmatprep.subr.mxu0 0.0
        %1017 = vmatpush1.msra.mxu0 0.0
        %1018 = vmatprep.subr.mxu0 0.0
        %1019 = vmatpush1.msra.mxu0 0.0
        %1020 = vmatprep.subr.mxu0 0.0
        %1021 = vmatpush1.msra.mxu0 0.0
        %1022 = vmatprep.subr.mxu0 0.0
        %1023 = vmatpush1.msra.mxu0 0.0
        %1024 = vmatprep.subr.mxu0 0.0
        %1025 = vmatpush1.msra.mxu0 0.0
        %1026 = vmatprep.subr.mxu0 0.0
        %1027 = vmatpush1.msra.mxu0 0.0
        %1028 = vmatprep.subr.mxu0 0.0
        %1029 = vmatpush1.msra.mxu0 0.0
        %1030 = vmatprep.subr.mxu0 0.0
        %1031 = vmatpush1.msra.mxu0 0.0
        %1032 = vmatprep.subr.mxu0 0.0
        %1033 = vmatpush1.msra.mxu0 0.0
        %1034 = vmatprep.subr.mxu0 0.0
        %1035 = vmatpush1.msra.mxu0 0.0
        %1036 = vmatprep.subr.mxu0 0.0
        %1037 = vmatpush1.msra.mxu0 0.0
        %1038 = vmatprep.subr.mxu0 0.0
        %1039 = vmatpush1.msra.mxu0 0.0
        %1040 = vmatprep.subr.mxu0 0.0
        %1041 = vmatpush1.msra.mxu0 0.0
        %1042 = vmatprep.subr.mxu0 0.0
        %1043 = vmatpush1.msra.mxu0 0.0
        %1044 = vmatprep.subr.mxu0 0.0
        %1045 = vmatpush1.msra.mxu0 0.0
        %1046 = vmatprep.subr.mxu0 0.0
        %1047 = vmatpush1.msra.mxu0 0.0
        %1048 = vmatprep.subr.mxu0 0.0
        %1049 = vmatpush1.msra.mxu0 0.0
        %1050 = vmatprep.subr.mxu0 0.0
        %1051 = vmatpush1.msra.mxu0 0.0
        %1052 = vmatprep.subr.mxu0 0.0
        %1053 = vmatpush1.msra.mxu0 0.0
        %1054 = vmatprep.subr.mxu0 0.0
        %1055 = vmatpush1.msra.mxu0 0.0
        %1056 = vmatprep.subr.mxu0 0.0
        %1057 = vmatpush1.msra.mxu0 0.0
        %1058 = vmatprep.subr.mxu0 0.0
        %1059 = vmatpush1.msra.mxu0 0.0
        %1060 = vmatprep.subr.mxu0 0.0
        %1061 = vmatpush1.msra.mxu0 0.0
        %1062 = vmatprep.subr.mxu0 0.0
        %1063 = vmatpush1.msra.mxu0 0.0
        %1064 = vmatprep.subr.mxu0 0.0
        %1065 = vmatpush1.msra.mxu0 0.0
        %1066 = vmatprep.subr.mxu0 0.0
        %1067 = vmatpush1.msra.mxu0 0.0
        %1068 = vmatprep.subr.mxu0 0.0
        %1069 = vmatpush1.msra.mxu0 0.0
        %1070 = vmatprep.subr.mxu0 0.0
        %1071 = vmatpush1.msra.mxu0 0.0
        %1072 = vmatprep.subr.mxu0 0.0
        %1073 = vmatpush1.msra.mxu0 0.0
        %1074 = vmatprep.subr.mxu0 0.0
        %1075 = vmatpush1.msra.mxu0 0.0
        %1076 = vmatprep.mubr.f32.mxu0 0.0
        %1077 = vmatmul.mubr.f32.gmra.mrb[0].mxu0 %v932
        %v1078 = vpop.f32.mrb[0].mxu0
        %v1079 = vadd.f32 %v929, %v1078
        %v1080 = vpop.f32.mrb[0].mxu0
        %1081 = vmatprep.mubr.f32.mxu0 0.0
        %1082 = vmatmul.mubr.f32.gmra.mrb[0].mxu0 %v935
        %v1083 = vpop.f32.mrb[0].mxu0
        %v1084 = vadd.f32 %v929, %v1083
        %v1085 = vpop.f32.mrb[0].mxu0
        %1086 = vmatprep.mubr.f32.mxu0 0.0
        %1087 = vmatmul.mubr.f32.gmra.mrb[0].mxu0 %v938
        %v1088 = vpop.f32.mrb[0].mxu0
        %v1089 = vadd.f32 %v929, %v1088
        %v1090 = vpop.f32.mrb[0].mxu0
        %1091 = vmatprep.mubr.f32.mxu0 0.0
        %1092 = vmatmul.mubr.f32.gmra.mrb[0].mxu0 %v941
        %v1093 = vpop.f32.mrb[0].mxu0
        %v1094 = vadd.f32 %v929, %v1093
        %v1095 = vpop.f32.mrb[0].mxu0
        %1096 = vmatprep.mubr.f32.mxu0 0.0
        %1097 = vmatmul.mubr.f32.gmra.mrb[0].mxu0 %v944
        %v1098 = vpop.f32.mrb[0].mxu0
        %v1099 = vadd.f32 %v929, %v1098
        %v1100 = vpop.f32.mrb[0].mxu0
        %1101 = vmatprep.mubr.f32.mxu0 0.0
        %1102 = vmatmul.mubr.f32.gmra.mrb[0].mxu0 %v947
        %v1103 = vpop.f32.mrb[0].mxu0
        %v1104 = vadd.f32 %v929, %v1103
        %v1105 = vpop.f32.mrb[0].mxu0
        %1106 = vmatprep.mubr.f32.mxu0 0.0
        %1107 = vmatmul.mubr.f32.gmra.mrb[0].mxu0 %v950
        %v1108 = vpop.f32.mrb[0].mxu0
        %v1109 = vadd.f32 %v929, %v1108
        %v1110 = vpop.f32.mrb[0].mxu0
        %1111 = vmatprep.mubr.f32.mxu0 0.0
        %1112 = vmatmul.mubr.f32.gmra.mrb[0].mxu0 %v953
        %v1113 = vpop.f32.mrb[0].mxu0
        %v1114 = vadd.f32 %v929, %v1113
        %v1115 = vpop.f32.mrb[0].mxu0
        %1116 = vmatprep.mubr.f32.mxu0 0.0
        %1117 = vmatmul.mubr.f32.gmra.mrb[0].mxu0 %v956
        %v1118 = vpop.f32.mrb[0].mxu0
        %v1119 = vadd.f32 %v929, %v1118
        %v1120 = vpop.f32.mrb[0].mxu0
        %1121 = vmatprep.mubr.f32.mxu0 0.0
        %1122 = vmatmul.mubr.f32.gmra.mrb[0].mxu0 %v959
        %v1123 = vpop.f32.mrb[0].mxu0
        %v1124 = vadd.f32 %v929, %v1123
        %v1125 = vpop.f32.mrb[0].mxu0
        %1126 = vmatprep.mubr.f32.mxu0 0.0
        %1127 = vmatmul.mubr.f32.gmra.mrb[0].mxu0 %v962
        %v1128 = vpop.f32.mrb[0].mxu0
        %v1129 = vadd.f32 %v929, %v1128
        %v1130 = vpop.f32.mrb[0].mxu0
        %1131 = vmatprep.mubr.f32.mxu0 0.0
        %1132 = vmatmul.mubr.f32.gmra.mrb[0].mxu0 %v965
        %v1133 = vpop.f32.mrb[0].mxu0
        %v1134 = vadd.f32 %v929, %v1133
        %v1135 = vpop.f32.mrb[0].mxu0
        %1136 = vmatprep.mubr.f32.mxu0 0.0
        %1137 = vmatmul.mubr.f32.gmra.mrb[0].mxu0 %v968
        %v1138 = vpop.f32.mrb[0].mxu0
        %v1139 = vadd.f32 %v929, %v1138
        %v1140 = vpop.f32.mrb[0].mxu0
        %1141 = vmatprep.mubr.f32.mxu0 0.0
        %1142 = vmatmul.mubr.f32.gmra.mrb[0].mxu0 %v971
        %v1143 = vpop.f32.mrb[0].mxu0
        %v1144 = vadd.f32 %v929, %v1143
        %v1145 = vpop.f32.mrb[0].mxu0
        %1146 = vmatprep.mubr.f32.mxu0 0.0
        %1147 = vmatmul.mubr.f32.gmra.mrb[0].mxu0 %v974
        %v1148 = vpop.f32.mrb[0].mxu0
        %v1149 = vadd.f32 %v929, %v1148
        %v1150 = vpop.f32.mrb[0].mxu0
        %1151 = vmatprep.mubr.f32.mxu0 0.0
        %1152 = vmatmul.mubr.f32.gmra.mrb[0].mxu0 %v977
        %v1153 = vpop.f32.mrb[0].mxu0
        %v1154 = vadd.f32 %v929, %v1153
        %v1155 = vpop.f32.mrb[0].mxu0
        %1156 = vmatprep.mubr.f32.mxu0 0.0
        %1157 = vmatmul.mubr.f32.gmra.mrb[0].mxu0 %v980
        %v1158 = vpop.f32.mrb[0].mxu0
        %v1159 = vadd.f32 %v929, %v1158
        %v1160 = vpop.f32.mrb[0].mxu0
        %1161 = vmatprep.mubr.f32.mxu0 0.0
        %1162 = vmatmul.mubr.f32.gmra.mrb[0].mxu0 %v983
        %v1163 = vpop.f32.mrb[0].mxu0
        %v1164 = vadd.f32 %v929, %v1163
        %v1165 = vpop.f32.mrb[0].mxu0
        %1166 = vmatprep.mubr.f32.mxu0 0.0
        %1167 = vmatmul.mubr.f32.gmra.mrb[0].mxu0 %v986
        %v1168 = vpop.f32.mrb[0].mxu0
        %v1169 = vadd.f32 %v929, %v1168
        %v1170 = vpop.f32.mrb[0].mxu0
        %1171 = vmatprep.mubr.f32.mxu0 0.0
        %1172 = vmatmul.mubr.f32.gmra.mrb[0].mxu0 %v989
        %v1173 = vpop.f32.mrb[0].mxu0
        %v1174 = vadd.f32 %v929, %v1173
        %v1175 = vpop.f32.mrb[0].mxu0
        %1176 = vmatprep.mubr.f32.mxu0 0.0
        %1177 = vmatmul.mubr.f32.gmra.mrb[0].mxu0 %v992
        %v1178 = vpop.f32.mrb[0].mxu0
        %v1179 = vadd.f32 %v929, %v1178
        %v1180 = vpop.f32.mrb[0].mxu0
        %1181 = vmatprep.mubr.f32.mxu0 0.0
        %1182 = vmatmul.mubr.f32.gmra.mrb[0].mxu0 %v995
        %v1183 = vpop.f32.mrb[0].mxu0
        %v1184 = vadd.f32 %v929, %v1183
        %v1185 = vpop.f32.mrb[0].mxu0
        %1186 = vmatprep.mubr.f32.mxu0 0.0
        %1187 = vmatmul.mubr.f32.gmra.mrb[0].mxu0 %v998
        %v1188 = vpop.f32.mrb[0].mxu0
        %v1189 = vadd.f32 %v929, %v1188
        %v1190 = vpop.f32.mrb[0].mxu0
        %1191 = vmatprep.mubr.f32.mxu0 0.0
        %1192 = vmatmul.mubr.f32.gmra.mrb[0].mxu0 %v1001
        %v1193 = vpop.f32.mrb[0].mxu0
        %v1194 = vadd.f32 %v929, %v1193
        %v1195 = vpop.f32.mrb[0].mxu0
        %1196 = vmatprep.mubr.f32.mxu0 0.0
        %1197 = vmatmul.mubr.f32.gmra.mrb[0].mxu0 %v1004
        %v1198 = vpop.f32.mrb[0].mxu0
        %v1199 = vadd.f32 %v929, %v1198
        %v1200 = vpop.f32.mrb[0].mxu0
        %1201 = vmatprep.mubr.f32.mxu0 0.0
        %1202 = vmatmul.mubr.f32.gmra.mrb[0].mxu0 %v1007
        %v1203 = vpop.f32.mrb[0].mxu0
        %v1204 = vadd.f32 %v929, %v1203
        %v1205 = vpop.f32.mrb[0].mxu0
        %1206 = vmatprep.mubr.f32.mxu0 0.0
        %1207 = vmatmul.mubr.f32.gmra.mrb[0].mxu0 %v1010
        %v1208 = vpop.f32.mrb[0].mxu0
        %v1209 = vadd.f32 %v929, %v1208
        %v1210 = vpop.f32.mrb[0].mxu0
        %1211 = vdwg.mxu0
        %v1212 = vld [vmem:[#allocation7 + $0x1] sm:$0x1]
        %v1213 = vlaneseq
        %v1214 = vshrl.u32 %v1213, 7
        %v1215 = vsub.s32 0, %v1214
        %v1216 = vrot.slane %v1212, %v1215
        %v1217 = vadd.f32 %v1079, %v1216
        %v1218 = vadd.f32 %v1084, %v1216
        %v1219 = vadd.f32 %v1089, %v1216
        %v1220 = vadd.f32 %v1094, %v1216
        %v1221 = vadd.f32 %v1099, %v1216
        %v1222 = vadd.f32 %v1104, %v1216
        %v1223 = vadd.f32 %v1109, %v1216
        %v1224 = vadd.f32 %v1114, %v1216
        %v1225 = vadd.f32 %v1119, %v1216
        %v1226 = vadd.f32 %v1124, %v1216
        %v1227 = vadd.f32 %v1129, %v1216
        %v1228 = vadd.f32 %v1134, %v1216
        %v1229 = vadd.f32 %v1139, %v1216
        %v1230 = vadd.f32 %v1144, %v1216
        %v1231 = vadd.f32 %v1149, %v1216
        %v1232 = vadd.f32 %v1154, %v1216
        %v1233 = vadd.f32 %v1159, %v1216
        %v1234 = vadd.f32 %v1164, %v1216
        %v1235 = vadd.f32 %v1169, %v1216
        %v1236 = vadd.f32 %v1174, %v1216
        %v1237 = vadd.f32 %v1179, %v1216
        %v1238 = vadd.f32 %v1184, %v1216
        %v1239 = vadd.f32 %v1189, %v1216
        %v1240 = vadd.f32 %v1194, %v1216
        %v1241 = vadd.f32 %v1199, %v1216
        %v1242 = vadd.f32 %v1204, %v1216
        %v1243 = vadd.f32 %v1209, %v1216
        %v1244 = vmax.f32 %v1217, 0.0
        %v1245 = vmax.f32 %v1218, 0.0
        %v1246 = vmax.f32 %v1219, 0.0
        %v1247 = vmax.f32 %v1220, 0.0
        %v1248 = vmax.f32 %v1221, 0.0
        %v1249 = vmax.f32 %v1222, 0.0
        %v1250 = vmax.f32 %v1223, 0.0
        %v1251 = vmax.f32 %v1224, 0.0
        %v1252 = vmax.f32 %v1225, 0.0
        %v1253 = vmax.f32 %v1226, 0.0
        %v1254 = vmax.f32 %v1227, 0.0
        %v1255 = vmax.f32 %v1228, 0.0
        %v1256 = vmax.f32 %v1229, 0.0
        %v1257 = vmax.f32 %v1230, 0.0
        %v1258 = vmax.f32 %v1231, 0.0
        %v1259 = vmax.f32 %v1232, 0.0
        %v1260 = vmax.f32 %v1233, 0.0
        %v1261 = vmax.f32 %v1234, 0.0
        %v1262 = vmax.f32 %v1235, 0.0
        %v1263 = vmax.f32 %v1236, 0.0
        %v1264 = vmax.f32 %v1237, 0.0
        %v1265 = vmax.f32 %v1238, 0.0
        %v1266 = vmax.f32 %v1239, 0.0
        %v1267 = vmax.f32 %v1240, 0.0
        %v1268 = vmax.f32 %v1241, 0.0
        %v1269 = vmax.f32 %v1242, 0.0
        %v1270 = vmax.f32 %v1243, 0.0
        %v1271 = vld [vmem:[%s6] sm:$0xff]
        %v1272 = vld [vmem:[%s6 + $0x8] sm:$0xff]
        %v1273 = vld [vmem:[%s6 + $0x10] sm:$0xff]
        %v1274 = vld [vmem:[%s6 + $0x18] sm:$0xff]
        %v1275 = vld [vmem:[#allocation7 + $0x2] sm:$0x1]
        %v1276 = vlaneseq
        %v1277 = vshrl.u32 %v1276, 7
        %v1278 = vsub.s32 0, %v1277
        %v1279 = vrot.slane %v1275, %v1278
        %v1281 = vsel %vm571, %v1244, 0
        %v1284 = vsel %vm571, %v1245, 0
        %v1287 = vsel %vm571, %v1246, 0
        %v1290 = vsel %vm571, %v1247, 0
        %v1293 = vsel %vm571, %v1248, 0
        %v1296 = vsel %vm571, %v1249, 0
        %v1299 = vsel %vm571, %v1250, 0
        %v1302 = vsel %vm571, %v1251, 0
        %v1305 = vsel %vm571, %v1252, 0
        %v1308 = vsel %vm571, %v1253, 0
        %v1311 = vsel %vm571, %v1254, 0
        %v1314 = vsel %vm571, %v1255, 0
        %v1317 = vsel %vm571, %v1256, 0
        %v1320 = vsel %vm571, %v1257, 0
        %v1323 = vsel %vm571, %v1258, 0
        %v1326 = vsel %vm571, %v1259, 0
        %v1329 = vsel %vm571, %v1260, 0
        %v1332 = vsel %vm571, %v1261, 0
        %v1335 = vsel %vm571, %v1262, 0
        %v1338 = vsel %vm571, %v1263, 0
        %v1341 = vsel %vm571, %v1264, 0
        %v1344 = vsel %vm571, %v1265, 0
        %v1347 = vsel %vm571, %v1266, 0
        %v1350 = vsel %vm571, %v1267, 0
        %v1353 = vsel %vm571, %v1268, 0
        %v1356 = vsel %vm571, %v1269, 0
        %v1359 = vsel %vm571, %v1270, 0
        %1361 = vmatprep.subr.mxu0 0.0
        %1362 = vmatpush1.msra.mxu0 %v1271
        %1363 = vmatprep.subr.mxu0 0.0
        %1364 = vmatpush1.msra.mxu0 %v1272
        %1365 = vmatprep.subr.mxu0 0.0
        %1366 = vmatpush1.msra.mxu0 %v1273
        %1367 = vmatprep.subr.mxu0 0.0
        %1368 = vmatpush1.msra.mxu0 %v1274
        %1369 = vmatprep.subr.mxu0 0.0
        %1370 = vmatpush1.msra.mxu0 0.0
        %1371 = vmatprep.subr.mxu0 0.0
        %1372 = vmatpush1.msra.mxu0 0.0
        %1373 = vmatprep.subr.mxu0 0.0
        %1374 = vmatpush1.msra.mxu0 0.0
        %1375 = vmatprep.subr.mxu0 0.0
        %1376 = vmatpush1.msra.mxu0 0.0
        %1377 = vmatprep.subr.mxu0 0.0
        %1378 = vmatpush1.msra.mxu0 0.0
        %1379 = vmatprep.subr.mxu0 0.0
        %1380 = vmatpush1.msra.mxu0 0.0
        %1381 = vmatprep.subr.mxu0 0.0
        %1382 = vmatpush1.msra.mxu0 0.0
        %1383 = vmatprep.subr.mxu0 0.0
        %1384 = vmatpush1.msra.mxu0 0.0
        %1385 = vmatprep.subr.mxu0 0.0
        %1386 = vmatpush1.msra.mxu0 0.0
        %1387 = vmatprep.subr.mxu0 0.0
        %1388 = vmatpush1.msra.mxu0 0.0
        %1389 = vmatprep.subr.mxu0 0.0
        %1390 = vmatpush1.msra.mxu0 0.0
        %1391 = vmatprep.subr.mxu0 0.0
        %1392 = vmatpush1.msra.mxu0 0.0
        %1393 = vmatprep.subr.mxu0 0.0
        %1394 = vmatpush1.msra.mxu0 0.0
        %1395 = vmatprep.subr.mxu0 0.0
        %1396 = vmatpush1.msra.mxu0 0.0
        %1397 = vmatprep.subr.mxu0 0.0
        %1398 = vmatpush1.msra.mxu0 0.0
        %1399 = vmatprep.subr.mxu0 0.0
        %1400 = vmatpush1.msra.mxu0 0.0
        %1401 = vmatprep.subr.mxu0 0.0
        %1402 = vmatpush1.msra.mxu0 0.0
        %1403 = vmatprep.subr.mxu0 0.0
        %1404 = vmatpush1.msra.mxu0 0.0
        %1405 = vmatprep.subr.mxu0 0.0
        %1406 = vmatpush1.msra.mxu0 0.0
        %1407 = vmatprep.subr.mxu0 0.0
        %1408 = vmatpush1.msra.mxu0 0.0
        %1409 = vmatprep.subr.mxu0 0.0
        %1410 = vmatpush1.msra.mxu0 0.0
        %1411 = vmatprep.subr.mxu0 0.0
        %1412 = vmatpush1.msra.mxu0 0.0
        %1413 = vmatprep.subr.mxu0 0.0
        %1414 = vmatpush1.msra.mxu0 0.0
        %1415 = vmatprep.subr.mxu0 0.0
        %1416 = vmatpush1.msra.mxu0 0.0
        %1417 = vmatprep.subr.mxu0 0.0
        %1418 = vmatpush1.msra.mxu0 0.0
        %1419 = vmatprep.subr.mxu0 0.0
        %1420 = vmatpush1.msra.mxu0 0.0
        %1421 = vmatprep.subr.mxu0 0.0
        %1422 = vmatpush1.msra.mxu0 0.0
        %1423 = vmatprep.subr.mxu0 0.0
        %1424 = vmatpush1.msra.mxu0 0.0
        %1425 = vmatprep.mubr.f32.mxu0 0.0
        %1426 = vmatmul.mubr.f32.gmra.mrb[0].mxu0 %v1281
        %v1427 = vpop.f32.mrb[0].mxu0
        %v1428 = vadd.f32 %v1279, %v1427
        %v1429 = vpop.f32.mrb[0].mxu0
        %1430 = vmatprep.mubr.f32.mxu0 0.0
        %1431 = vmatmul.mubr.f32.gmra.mrb[0].mxu0 %v1284
        %v1432 = vpop.f32.mrb[0].mxu0
        %v1433 = vadd.f32 %v1279, %v1432
        %v1434 = vpop.f32.mrb[0].mxu0
        %1435 = vmatprep.mubr.f32.mxu0 0.0
        %1436 = vmatmul.mubr.f32.gmra.mrb[0].mxu0 %v1287
        %v1437 = vpop.f32.mrb[0].mxu0
        %v1438 = vadd.f32 %v1279, %v1437
        %v1439 = vpop.f32.mrb[0].mxu0
        %1440 = vmatprep.mubr.f32.mxu0 0.0
        %1441 = vmatmul.mubr.f32.gmra.mrb[0].mxu0 %v1290
        %v1442 = vpop.f32.mrb[0].mxu0
        %v1443 = vadd.f32 %v1279, %v1442
        %v1444 = vpop.f32.mrb[0].mxu0
        %1445 = vmatprep.mubr.f32.mxu0 0.0
        %1446 = vmatmul.mubr.f32.gmra.mrb[0].mxu0 %v1293
        %v1447 = vpop.f32.mrb[0].mxu0
        %v1448 = vadd.f32 %v1279, %v1447
        %v1449 = vpop.f32.mrb[0].mxu0
        %1450 = vmatprep.mubr.f32.mxu0 0.0
        %1451 = vmatmul.mubr.f32.gmra.mrb[0].mxu0 %v1296
        %v1452 = vpop.f32.mrb[0].mxu0
        %v1453 = vadd.f32 %v1279, %v1452
        %v1454 = vpop.f32.mrb[0].mxu0
        %1455 = vmatprep.mubr.f32.mxu0 0.0
        %1456 = vmatmul.mubr.f32.gmra.mrb[0].mxu0 %v1299
        %v1457 = vpop.f32.mrb[0].mxu0
        %v1458 = vadd.f32 %v1279, %v1457
        %v1459 = vpop.f32.mrb[0].mxu0
        %1460 = vmatprep.mubr.f32.mxu0 0.0
        %1461 = vmatmul.mubr.f32.gmra.mrb[0].mxu0 %v1302
        %v1462 = vpop.f32.mrb[0].mxu0
        %v1463 = vadd.f32 %v1279, %v1462
        %v1464 = vpop.f32.mrb[0].mxu0
        %1465 = vmatprep.mubr.f32.mxu0 0.0
        %1466 = vmatmul.mubr.f32.gmra.mrb[0].mxu0 %v1305
        %v1467 = vpop.f32.mrb[0].mxu0
        %v1468 = vadd.f32 %v1279, %v1467
        %v1469 = vpop.f32.mrb[0].mxu0
        %1470 = vmatprep.mubr.f32.mxu0 0.0
        %1471 = vmatmul.mubr.f32.gmra.mrb[0].mxu0 %v1308
        %v1472 = vpop.f32.mrb[0].mxu0
        %v1473 = vadd.f32 %v1279, %v1472
        %v1474 = vpop.f32.mrb[0].mxu0
        %1475 = vmatprep.mubr.f32.mxu0 0.0
        %1476 = vmatmul.mubr.f32.gmra.mrb[0].mxu0 %v1311
        %v1477 = vpop.f32.mrb[0].mxu0
        %v1478 = vadd.f32 %v1279, %v1477
        %v1479 = vpop.f32.mrb[0].mxu0
        %1480 = vmatprep.mubr.f32.mxu0 0.0
        %1481 = vmatmul.mubr.f32.gmra.mrb[0].mxu0 %v1314
        %v1482 = vpop.f32.mrb[0].mxu0
        %v1483 = vadd.f32 %v1279, %v1482
        %v1484 = vpop.f32.mrb[0].mxu0
        %1485 = vmatprep.mubr.f32.mxu0 0.0
        %1486 = vmatmul.mubr.f32.gmra.mrb[0].mxu0 %v1317
        %v1487 = vpop.f32.mrb[0].mxu0
        %v1488 = vadd.f32 %v1279, %v1487
        %v1489 = vpop.f32.mrb[0].mxu0
        %1490 = vmatprep.mubr.f32.mxu0 0.0
        %1491 = vmatmul.mubr.f32.gmra.mrb[0].mxu0 %v1320
        %v1492 = vpop.f32.mrb[0].mxu0
        %v1493 = vadd.f32 %v1279, %v1492
        %v1494 = vpop.f32.mrb[0].mxu0
        %1495 = vmatprep.mubr.f32.mxu0 0.0
        %1496 = vmatmul.mubr.f32.gmra.mrb[0].mxu0 %v1323
        %v1497 = vpop.f32.mrb[0].mxu0
        %v1498 = vadd.f32 %v1279, %v1497
        %v1499 = vpop.f32.mrb[0].mxu0
        %1500 = vmatprep.mubr.f32.mxu0 0.0
        %1501 = vmatmul.mubr.f32.gmra.mrb[0].mxu0 %v1326
        %v1502 = vpop.f32.mrb[0].mxu0
        %v1503 = vadd.f32 %v1279, %v1502
        %v1504 = vpop.f32.mrb[0].mxu0
        %1505 = vmatprep.mubr.f32.mxu0 0.0
        %1506 = vmatmul.mubr.f32.gmra.mrb[0].mxu0 %v1329
        %v1507 = vpop.f32.mrb[0].mxu0
        %v1508 = vadd.f32 %v1279, %v1507
        %v1509 = vpop.f32.mrb[0].mxu0
        %1510 = vmatprep.mubr.f32.mxu0 0.0
        %1511 = vmatmul.mubr.f32.gmra.mrb[0].mxu0 %v1332
        %v1512 = vpop.f32.mrb[0].mxu0
        %v1513 = vadd.f32 %v1279, %v1512
        %v1514 = vpop.f32.mrb[0].mxu0
        %1515 = vmatprep.mubr.f32.mxu0 0.0
        %1516 = vmatmul.mubr.f32.gmra.mrb[0].mxu0 %v1335
        %v1517 = vpop.f32.mrb[0].mxu0
        %v1518 = vadd.f32 %v1279, %v1517
        %v1519 = vpop.f32.mrb[0].mxu0
        %1520 = vmatprep.mubr.f32.mxu0 0.0
        %1521 = vmatmul.mubr.f32.gmra.mrb[0].mxu0 %v1338
        %v1522 = vpop.f32.mrb[0].mxu0
        %v1523 = vadd.f32 %v1279, %v1522
        %v1524 = vpop.f32.mrb[0].mxu0
        %1525 = vmatprep.mubr.f32.mxu0 0.0
        %1526 = vmatmul.mubr.f32.gmra.mrb[0].mxu0 %v1341
        %v1527 = vpop.f32.mrb[0].mxu0
        %v1528 = vadd.f32 %v1279, %v1527
        %v1529 = vpop.f32.mrb[0].mxu0
        %1530 = vmatprep.mubr.f32.mxu0 0.0
        %1531 = vmatmul.mubr.f32.gmra.mrb[0].mxu0 %v1344
        %v1532 = vpop.f32.mrb[0].mxu0
        %v1533 = vadd.f32 %v1279, %v1532
        %v1534 = vpop.f32.mrb[0].mxu0
        %1535 = vmatprep.mubr.f32.mxu0 0.0
        %1536 = vmatmul.mubr.f32.gmra.mrb[0].mxu0 %v1347
        %v1537 = vpop.f32.mrb[0].mxu0
        %v1538 = vadd.f32 %v1279, %v1537
        %v1539 = vpop.f32.mrb[0].mxu0
        %1540 = vmatprep.mubr.f32.mxu0 0.0
        %1541 = vmatmul.mubr.f32.gmra.mrb[0].mxu0 %v1350
        %v1542 = vpop.f32.mrb[0].mxu0
        %v1543 = vadd.f32 %v1279, %v1542
        %v1544 = vpop.f32.mrb[0].mxu0
        %1545 = vmatprep.mubr.f32.mxu0 0.0
        %1546 = vmatmul.mubr.f32.gmra.mrb[0].mxu0 %v1353
        %v1547 = vpop.f32.mrb[0].mxu0
        %v1548 = vadd.f32 %v1279, %v1547
        %v1549 = vpop.f32.mrb[0].mxu0
        %1550 = vmatprep.mubr.f32.mxu0 0.0
        %1551 = vmatmul.mubr.f32.gmra.mrb[0].mxu0 %v1356
        %v1552 = vpop.f32.mrb[0].mxu0
        %v1553 = vadd.f32 %v1279, %v1552
        %v1554 = vpop.f32.mrb[0].mxu0
        %1555 = vmatprep.mubr.f32.mxu0 0.0
        %1556 = vmatmul.mubr.f32.gmra.mrb[0].mxu0 %v1359
        %v1557 = vpop.f32.mrb[0].mxu0
        %v1558 = vadd.f32 %v1279, %v1557
        %v1559 = vpop.f32.mrb[0].mxu0
        %1560 = vdwg.mxu0
        %vm1561 = vcmask 23552
        %1562 = vst.msk [vmem:[%s398] sm:$0xff] %vm1561, %v1428
        %1563 = vst.msk [vmem:[%s398 + $0x8] sm:$0xff] %vm1561, %v1433
        %1564 = vst.msk [vmem:[%s398 + $0x10] sm:$0xff] %vm1561, %v1438
        %1565 = vst.msk [vmem:[%s398 + $0x18] sm:$0xff] %vm1561, %v1443
        %1566 = vst.msk [vmem:[%s398 + $0x20] sm:$0xff] %vm1561, %v1448
        %1567 = vst.msk [vmem:[%s398 + $0x28] sm:$0xff] %vm1561, %v1453
        %1568 = vst.msk [vmem:[%s398 + $0x30] sm:$0xff] %vm1561, %v1458
        %1569 = vst.msk [vmem:[%s398 + $0x38] sm:$0xff] %vm1561, %v1463
        %1570 = vst.msk [vmem:[%s398 + $0x40] sm:$0xff] %vm1561, %v1468
        %1571 = vst.msk [vmem:[%s398 + $0x48] sm:$0xff] %vm1561, %v1473
        %1572 = vst.msk [vmem:[%s398 + $0x50] sm:$0xff] %vm1561, %v1478
        %1573 = vst.msk [vmem:[%s398 + $0x58] sm:$0xff] %vm1561, %v1483
        %1574 = vst.msk [vmem:[%s398 + $0x60] sm:$0xff] %vm1561, %v1488
        %1575 = vst.msk [vmem:[%s398 + $0x68] sm:$0xff] %vm1561, %v1493
        %1576 = vst.msk [vmem:[%s398 + $0x70] sm:$0xff] %vm1561, %v1498
        %1577 = vst.msk [vmem:[%s398 + $0x78] sm:$0xff] %vm1561, %v1503
        %1578 = vst.msk [vmem:[%s398 + $0x80] sm:$0xff] %vm1561, %v1508
        %1579 = vst.msk [vmem:[%s398 + $0x88] sm:$0xff] %vm1561, %v1513
        %1580 = vst.msk [vmem:[%s398 + $0x90] sm:$0xff] %vm1561, %v1518
        %1581 = vst.msk [vmem:[%s398 + $0x98] sm:$0xff] %vm1561, %v1523
        %1582 = vst.msk [vmem:[%s398 + $0xa0] sm:$0xff] %vm1561, %v1528
        %1583 = vst.msk [vmem:[%s398 + $0xa8] sm:$0xff] %vm1561, %v1533
        %1584 = vst.msk [vmem:[%s398 + $0xb0] sm:$0xff] %vm1561, %v1538
        %1585 = vst.msk [vmem:[%s398 + $0xb8] sm:$0xff] %vm1561, %v1543
        %1586 = vst.msk [vmem:[%s398 + $0xc0] sm:$0xff] %vm1561, %v1548
        %1587 = vst.msk [vmem:[%s398 + $0xc8] sm:$0xff] %vm1561, %v1553
        %1588 = vst.msk [vmem:[%s398 + $0xd0] sm:$0xff] %vm1561, %v1558
        %s1589 = smul.u32 27, %s27
        %p1590 = scmp.lt.s32.totalorder %s26, 1
        %s1591 = scalar_select %p1590, %s26, 1
        %p1592 = scmp.lt.s32.totalorder %s1589, 242
        %s1593 = scalar_select %p1592, %s1589, 242
        %s1594 = smul.addr %s1591, 243
        %s1595 = sadd.s32 %s1593, %s1594
        %s1596 = smul.addr %s1595, 8
        %s1597 = scalar_lea.vmem %s8, %s1596
        // Predicated region
        $region69: #{foldingnet_shapes_forward.3} parent=51 // pred_check
          %p1598 = pneg %p232
        $region70: #{foldingnet_shapes_forward.3} parent=51 // pred_check_branch
          %1600 = sbr.rel (%p1598) target = $region72
        $region71: #{foldingnet_shapes_forward.3} parent=51 // pred_region
          %s1601 = smul.u32 27, %s27
        $region72: #{foldingnet_shapes_forward.3} parent=51 // pred_fallthru
          _
      $region52: #{foldingnet_shapes_forward.3} parent=5 // pred_fallthru
        _
      %p1602 = scmp.le.s32.totalorder 2, %s17
      // Predicated region
      $region73: #{foldingnet_shapes_forward.3} parent=5 // pred_check
        %p1603 = pneg %p1602
      $region74: #{foldingnet_shapes_forward.3} parent=5 // pred_check_branch
        %1605 = sbr.rel (%p1603) target = $region76
      $region75: #{foldingnet_shapes_forward.3} parent=5 // pred_region
        %s1606 = ssub.s32 %s17, 2
        // Predicated region
        $region77: #{foldingnet_shapes_forward.3} parent=75 // pred_check
          %p1607 = pneg %p238
        $region78: #{foldingnet_shapes_forward.3} parent=75 // pred_check_branch
          %1609 = sbr.rel (%p1607) target = $region80
        $region79: #{foldingnet_shapes_forward.3} parent=75 // pred_region
          %s1610 = smul.u32 27, %s29
          %p1611 = scmp.lt.s32.totalorder %s28, 1
          %s1612 = scalar_select %p1611, %s28, 1
          %p1613 = scmp.lt.s32.totalorder %s1610, 242
          %s1614 = scalar_select %p1613, %s1610, 242
          %s1615 = smul.addr %s1612, 243
          %s1616 = sadd.s32 %s1614, %s1615
          %s1617 = smul.addr %s1616, 8
          %s1618 = scalar_lea.vmem %s8, %s1617
        $region80: #{foldingnet_shapes_forward.3} parent=75 // pred_fallthru
          _
      $region76: #{foldingnet_shapes_forward.3} parent=5 // pred_fallthru
        _
    $region6: #{foldingnet_shapes_forward.3} parent=1 // loop_footer
      %s21 = sadd.s32 1, %s17
    $region7: #{foldingnet_shapes_forward.3} parent=1 // loop_footer_branch
      %16 = sbr.rel target = $region3
    $region8: #{foldingnet_shapes_forward.3} parent=1 // loop_exit
      _
    %1619 = vsyncpa [#allocation3], 1
    %s1620 = scalar_lea.sflag [#allocation3], 1
    %1621 = vsyncpa %s1620, 1
    %1622 = vsyncpa [#allocation5], 1
    %1623 = vsyncpa [#allocation8], 1

</llo_original>
